<compile_context>
chip_gen: v7x
topology: tpu7x:2x2x1
jax: 0.10.0
libtpu: 0.0.40
codegen_flags: <defaults>
</compile_context>

<pallas_src>
import functools
import math

import jax
import jax.numpy as jnp
from jax import lax
from jax.experimental import pallas as pl
from jax.experimental.pallas import tpu as pltpu  # noqa: F401  (kept for TPU-specific tuning hooks)


# ---------------------------------------------------------------------------
# Config (small, deterministic)
# ---------------------------------------------------------------------------
CFG = dict(
    emb_dim=32,
    context_lenght=8,   # spelling kept from the reference module
    n_heads=4,
    drop_rate=0.0,
    qkv_bias=True,
)
BATCH = 2

MASK_VALUE = -1e30      # large finite negative instead of -inf (NaN-safe)


def _gelu_tanh(x):
    # GELU (tanh approximation), matching the "from scratch" GELU module.
    return 0.5 * x * (1.0 + jnp.tanh(
        jnp.sqrt(2.0 / jnp.pi) * (x + 0.044715 * x * x * x)))


def _layer_norm(x, scale, shift, eps=1e-5):
    mu = jnp.mean(x, axis=-1, keepdims=True)
    var = jnp.mean((x - mu) ** 2, axis=-1, keepdims=True)   # unbiased=False
    return (x - mu) / jnp.sqrt(var + eps) * scale + shift


# ---------------------------------------------------------------------------
# Pallas kernel: whole batch in one invocation, x flattened to (B*T, D)
# ---------------------------------------------------------------------------
def transformer_block_kernel(num_heads, seq_len,
                             x_ref, w_attn_ref, w1_ref, w2_ref, bias_ref,
                             o_ref):
    x = x_ref[...].astype(jnp.float32)          # (N, D) slab, N = B*T
    N, D = x.shape
    T = seq_len
    B = N // T
    hd = D // num_heads

    # packed (8, 4D) parameter slab: one DMA, sliced here (static slices)
    bias = bias_ref[...]
    ln1_g, ln1_b = bias[0:1, :D], bias[1:2, :D]
    b_qkv = bias[2:3, :3 * D]
    b_o = bias[3:4, :D]
    ln2_g, ln2_b = bias[4:5, :D], bias[5:6, :D]
    b_1 = bias[6:7, :]                          # (1, 4D)
    b_2 = bias[7:8, :D]

    # packed attention weights: [wq | wk | wv | wo] -> (D, 4D)
    w_attn = w_attn_ref[...]
    w_qkv = w_attn[:, :3 * D]
    w_o = w_attn[:, 3 * D:]

    # ---- sub-block 1: LN -> causal MHA -> (dropout=id) -> residual ----------
    h = _layer_norm(x, ln1_g, ln1_b)
    qkv = jnp.dot(h, w_qkv, preferred_element_type=jnp.float32) + b_qkv  # (N,3D)
    q = qkv[:, 0:D] * (1.0 / math.sqrt(hd))     # fold softmax scale into q once
    k = qkv[:, D:2 * D]
    v = qkv[:, 2 * D:3 * D]

    # block-causal mask over the flattened (B*T, B*T) score matrix:
    # allowed(i, j)  <=>  same batch  AND  j <= i     (pure VPU compares)
    rows = lax.broadcasted_iota(jnp.int32, (N, N), 0)
    cols = lax.broadcasted_iota(jnp.int32, (N, N), 1)
    causal = cols <= rows

    def batch_block(b):
        in_row = jnp.logical_and(rows >= b * T, rows < (b + 1) * T)
        in_col = jnp.logical_and(cols >= b * T, cols < (b + 1) * T)
        return jnp.logical_and(in_row, in_col)

    same_batch = batch_block(0)
    for b in range(1, B):                       # static unroll, B is tiny
        same_batch = jnp.logical_or(same_batch, batch_block(b))
    masked_out = jnp.logical_not(jnp.logical_and(causal, same_batch))

    attn = jnp.zeros((N, D), jnp.float32)
    for hix in range(num_heads):                # static unroll over heads
        sl = slice(hix * hd, (hix + 1) * hd)
        # q_h @ k_h^T without materializing a transpose
        s = lax.dot_general(q[:, sl], k[:, sl], (((1,), (1,)), ((), ())),
                            preferred_element_type=jnp.float32)      # (N, N)
        s = jnp.where(masked_out, MASK_VALUE, s)
        s = s - jnp.max(s, axis=-1, keepdims=True)
        p = jnp.exp(s)
        p = p / jnp.sum(p, axis=-1, keepdims=True)
        # attention-weight dropout with rate 0.0 is identity
        ctx = jnp.dot(p, v[:, sl], preferred_element_type=jnp.float32)  # (N, hd)
        # accumulate the output projection per head: no lane-narrow concat
        attn = attn + jnp.dot(ctx, w_o[sl, :],
                              preferred_element_type=jnp.float32)       # (N, D)

    x = x + attn + b_o                          # residual (shortcut dropout = id)

    # ---- sub-block 2: LN -> FF (Linear -> GELU -> Linear) -> residual -------
    h2 = _layer_norm(x, ln2_g, ln2_b)
    f = jnp.dot(h2, w1_ref[...], preferred_element_type=jnp.float32) + b_1
    f = _gelu_tanh(f)
    f = jnp.dot(f, w2_ref[...], preferred_element_type=jnp.float32) + b_2

    o_ref[...] = (x + f).astype(o_ref.dtype)


# ---------------------------------------------------------------------------
# Wrapper: pack params, flatten batch, single pallas_call (no grid)
# ---------------------------------------------------------------------------
def dummy_transformer_block(x, params, num_heads):
    B, T, D = x.shape
    N = B * T
    D4 = 4 * D

    # fuse attention weights into one (D, 4D) slab: [wq | wk | wv | wo]
    w_attn = jnp.concatenate(
        [params["wq"], params["wk"], params["wv"], params["wo"]], axis=1)

    # pack all (1, n) LN / bias params into a single lane-dense (8, 4D) slab
    def row(v):
        v = v.reshape(1, -1)
        return jnp.pad(v, ((0, 0), (0, D4 - v.shape[1])))

    bias_pack = jnp.concatenate([
        row(params["ln1_g"]), row(params["ln1_b"]),
        row(jnp.concatenate([params["bq"], params["bk"], params["bv"]], axis=1)),
        row(params["bo"]),
        row(params["ln2_g"]), row(params["ln2_b"]),
        row(params["b1"]), row(params["b2"]),
    ], axis=0)                                   # (8, 4D)

    kernel = functools.partial(transformer_block_kernel, num_heads, T)

    out = pl.pallas_call(
        kernel,
        out_shape=jax.ShapeDtypeStruct((N, D), x.dtype),
        # no grid: one invocation; default BlockSpecs place whole arrays in VMEM
    )(x.reshape(N, D), w_attn, params["w1"], params["w2"], bias_pack)

    return out.reshape(B, T, D)


# ---------------------------------------------------------------------------
# Pure-JAX reference (for a correctness check)
# ---------------------------------------------------------------------------
def reference_block(x, p, num_heads):
    B, T, D = x.shape
    hd = D // num_heads

    h = _layer_norm(x, p["ln1_g"], p["ln1_b"])
    q = h @ p["wq"] + p["bq"]
    k = h @ p["wk"] + p["bk"]
    v = h @ p["wv"] + p["bv"]

    def split(a):
        return a.reshape(B, T, num_heads, hd).transpose(0, 2, 1, 3)  # (B,H,T,hd)

    qh, kh, vh = split(q), split(k), split(v)
    scores = jnp.einsum("bhqd,bhkd->bhqk", qh, kh)
    mask = jnp.triu(jnp.ones((T, T), dtype=bool), k=1)
    scores = jnp.where(mask, -jnp.inf, scores) / math.sqrt(hd)
    w = jax.nn.softmax(scores, axis=-1)
    ctx = jnp.einsum("bhqk,bhkd->bhqd", w, vh).transpose(0, 2, 1, 3).reshape(B, T, D)
    x = x + (ctx @ p["wo"] + p["bo"])

    h2 = _layer_norm(x, p["ln2_g"], p["ln2_b"])
    f = _gelu_tanh(h2 @ p["w1"] + p["b1"]) @ p["w2"] + p["b2"]
    return x + f


# ---------------------------------------------------------------------------
# Deterministic parameter init + demo
# ---------------------------------------------------------------------------
def make_params(key, emb_dim):
    d = emb_dim
    d_ff = 4 * d
    keys = jax.random.split(key, 12)

    def lin_w(k, fan_in, fan_out):
        bound = 1.0 / math.sqrt(fan_in)
        return jax.random.uniform(k, (fan_in, fan_out), jnp.float32, -bound, bound)

    def lin_b(k, fan_in, fan_out):
        bound = 1.0 / math.sqrt(fan_in)
        return jax.random.uniform(k, (1, fan_out), jnp.float32, -bound, bound)

    return dict(
        ln1_g=jnp.ones((1, d), jnp.float32),
        ln1_b=jnp.zeros((1, d), jnp.float32),
        wq=lin_w(keys[0], d, d), bq=lin_b(keys[1], d, d),
        wk=lin_w(keys[2], d, d), bk=lin_b(keys[3], d, d),
        wv=lin_w(keys[4], d, d), bv=lin_b(keys[5], d, d),
        wo=lin_w(keys[6], d, d), bo=lin_b(keys[7], d, d),
        ln2_g=jnp.ones((1, d), jnp.float32),
        ln2_b=jnp.zeros((1, d), jnp.float32),
        w1=lin_w(keys[8], d, d_ff), b1=lin_b(keys[9], d, d_ff),
        w2=lin_w(keys[10], d_ff, d), b2=lin_b(keys[11], d_ff, d),
    )


if __name__ == "__main__":
    key = jax.random.PRNGKey(0)
    kx, kp = jax.random.split(key)

    B, T, D = BATCH, CFG["context_lenght"], CFG["emb_dim"]
    x = jax.random.normal(kx, (B, T, D), dtype=jnp.float32)
    params = make_params(kp, D)

    out = dummy_transformer_block(x, params, CFG["n_heads"])
    out = jax.block_until_ready(out)

    ref = reference_block(x, params, CFG["n_heads"])
    assert out.shape == (B, T, D)
    assert jnp.allclose(out, ref, atol=1e-4, rtol=1e-4), "Pallas output mismatch"

    print("KERNEL_OK")
</pallas_src>

<mosaic_0001>
module attributes {stable_mosaic.version = 11 : i64} {
  func.func @transformer_block_kernel(%arg0: memref<16x32xf32, #tpu.memory_space<vmem>>, %arg1: memref<32x128xf32, #tpu.memory_space<vmem>>, %arg2: memref<32x128xf32, #tpu.memory_space<vmem>>, %arg3: memref<128x32xf32, #tpu.memory_space<vmem>>, %arg4: memref<8x128xf32, #tpu.memory_space<vmem>>, %arg5: memref<16x32xf32, #tpu.memory_space<vmem>>) attributes {dimension_semantics = [], scalar_prefetch = 0 : i64, scratch_operands = 0 : i64, tpu.core_type = #tpu.core_type<tc>} {
    %c0 = arith.constant 0 : index
    %c0_0 = arith.constant 0 : index
    %0 = vector.load %arg0[%c0, %c0_0] : memref<16x32xf32, #tpu.memory_space<vmem>>, vector<16x32xf32>
    %c0_1 = arith.constant 0 : index
    %c0_2 = arith.constant 0 : index
    %1 = vector.load %arg4[%c0_1, %c0_2] : memref<8x128xf32, #tpu.memory_space<vmem>>, vector<8x128xf32>
    %2 = vector.extract_strided_slice %1 {offsets = [0, 0], sizes = [1, 32], strides = [1, 1]} : vector<8x128xf32> to vector<1x32xf32>
    %3 = vector.extract_strided_slice %1 {offsets = [1, 0], sizes = [1, 32], strides = [1, 1]} : vector<8x128xf32> to vector<1x32xf32>
    %4 = vector.extract_strided_slice %1 {offsets = [2, 0], sizes = [1, 96], strides = [1, 1]} : vector<8x128xf32> to vector<1x96xf32>
    %5 = vector.extract_strided_slice %1 {offsets = [3, 0], sizes = [1, 32], strides = [1, 1]} : vector<8x128xf32> to vector<1x32xf32>
    %6 = vector.extract_strided_slice %1 {offsets = [4, 0], sizes = [1, 32], strides = [1, 1]} : vector<8x128xf32> to vector<1x32xf32>
    %7 = vector.extract_strided_slice %1 {offsets = [5, 0], sizes = [1, 32], strides = [1, 1]} : vector<8x128xf32> to vector<1x32xf32>
    %8 = vector.extract_strided_slice %1 {offsets = [6, 0], sizes = [1, 128], strides = [1, 1]} : vector<8x128xf32> to vector<1x128xf32>
    %9 = vector.extract_strided_slice %1 {offsets = [7, 0], sizes = [1, 32], strides = [1, 1]} : vector<8x128xf32> to vector<1x32xf32>
    %c0_3 = arith.constant 0 : index
    %c0_4 = arith.constant 0 : index
    %10 = vector.load %arg1[%c0_3, %c0_4] : memref<32x128xf32, #tpu.memory_space<vmem>>, vector<32x128xf32>
    %11 = vector.extract_strided_slice %10 {offsets = [0, 0], sizes = [32, 96], strides = [1, 1]} : vector<32x128xf32> to vector<32x96xf32>
    %12 = vector.extract_strided_slice %10 {offsets = [0, 96], sizes = [32, 32], strides = [1, 1]} : vector<32x128xf32> to vector<32x32xf32>
    %cst = arith.constant dense<0.000000e+00> : vector<16xf32>
    %13 = vector.multi_reduction <add>, %0, %cst [1] : vector<16x32xf32> to vector<16xf32>
    %14 = vector.shape_cast %13 : vector<16xf32> to vector<16x1xf32>
    %cst_5 = arith.constant 3.200000e+01 : f32
    %15 = vector.broadcast %cst_5 : f32 to vector<16x1xf32>
    %16 = arith.divf %14, %15 : vector<16x1xf32>
    %17 = vector.broadcast %16 : vector<16x1xf32> to vector<16x32xf32>
    %18 = arith.subf %0, %17 : vector<16x32xf32>
    %19 = arith.mulf %18, %18 : vector<16x32xf32>
    %cst_6 = arith.constant dense<0.000000e+00> : vector<16xf32>
    %20 = vector.multi_reduction <add>, %19, %cst_6 [1] : vector<16x32xf32> to vector<16xf32>
    %21 = vector.shape_cast %20 : vector<16xf32> to vector<16x1xf32>
    %cst_7 = arith.constant 3.200000e+01 : f32
    %22 = vector.broadcast %cst_7 : f32 to vector<16x1xf32>
    %23 = arith.divf %21, %22 : vector<16x1xf32>
    %24 = vector.broadcast %16 : vector<16x1xf32> to vector<16x32xf32>
    %25 = arith.subf %0, %24 : vector<16x32xf32>
    %cst_8 = arith.constant 9.99999974E-6 : f32
    %26 = vector.broadcast %cst_8 : f32 to vector<16x1xf32>
    %27 = arith.addf %23, %26 : vector<16x1xf32>
    %28 = math.sqrt %27 : vector<16x1xf32>
    %29 = vector.broadcast %28 : vector<16x1xf32> to vector<16x32xf32>
    %30 = arith.divf %25, %29 : vector<16x32xf32>
    %31 = vector.broadcast %2 : vector<1x32xf32> to vector<16x32xf32>
    %32 = arith.mulf %30, %31 : vector<16x32xf32>
    %33 = vector.broadcast %3 : vector<1x32xf32> to vector<16x32xf32>
    %34 = arith.addf %32, %33 : vector<16x32xf32>
    %cst_9 = arith.constant dense<0.000000e+00> : vector<16x96xf32>
    %35 = tpu.matmul %34, %11, %cst_9 {dimension_numbers = #tpu.dot_dimension_numbers<[1], [0], [0], [1], [0, 0, 1, 1], [], []>} : vector<16x32xf32>, vector<32x96xf32>, vector<16x96xf32> -> vector<16x96xf32>
    %36 = vector.broadcast %4 : vector<1x96xf32> to vector<16x96xf32>
    %37 = arith.addf %35, %36 : vector<16x96xf32>
    %38 = vector.extract_strided_slice %37 {offsets = [0, 0], sizes = [16, 32], strides = [1, 1]} : vector<16x96xf32> to vector<16x32xf32>
    %cst_10 = arith.constant 0.353553385 : f32
    %39 = vector.broadcast %cst_10 : f32 to vector<16x32xf32>
    %40 = arith.mulf %38, %39 : vector<16x32xf32>
    %41 = vector.extract_strided_slice %37 {offsets = [0, 32], sizes = [16, 32], strides = [1, 1]} : vector<16x96xf32> to vector<16x32xf32>
    %42 = vector.extract_strided_slice %37 {offsets = [0, 64], sizes = [16, 32], strides = [1, 1]} : vector<16x96xf32> to vector<16x32xf32>
    %43 = tpu.iota {dimensions = array<i32: 0>} : vector<16x16xi32>
    %44 = tpu.iota {dimensions = array<i32: 1>} : vector<16x16xi32>
    %45 = arith.cmpi sle, %44, %43 : vector<16x16xi32>
    %c0_i32 = arith.constant 0 : i32
    %46 = vector.broadcast %c0_i32 : i32 to vector<16x16xi32>
    %47 = arith.cmpi sge, %43, %46 : vector<16x16xi32>
    %c8_i32 = arith.constant 8 : i32
    %48 = vector.broadcast %c8_i32 : i32 to vector<16x16xi32>
    %49 = arith.cmpi slt, %43, %48 : vector<16x16xi32>
    %50 = arith.andi %47, %49 : vector<16x16xi1>
    %c0_i32_11 = arith.constant 0 : i32
    %51 = vector.broadcast %c0_i32_11 : i32 to vector<16x16xi32>
    %52 = arith.cmpi sge, %44, %51 : vector<16x16xi32>
    %c8_i32_12 = arith.constant 8 : i32
    %53 = vector.broadcast %c8_i32_12 : i32 to vector<16x16xi32>
    %54 = arith.cmpi slt, %44, %53 : vector<16x16xi32>
    %55 = arith.andi %52, %54 : vector<16x16xi1>
    %56 = arith.andi %50, %55 : vector<16x16xi1>
    %c8_i32_13 = arith.constant 8 : i32
    %57 = vector.broadcast %c8_i32_13 : i32 to vector<16x16xi32>
    %58 = arith.cmpi sge, %43, %57 : vector<16x16xi32>
    %c16_i32 = arith.constant 16 : i32
    %59 = vector.broadcast %c16_i32 : i32 to vector<16x16xi32>
    %60 = arith.cmpi slt, %43, %59 : vector<16x16xi32>
    %61 = arith.andi %58, %60 : vector<16x16xi1>
    %c8_i32_14 = arith.constant 8 : i32
    %62 = vector.broadcast %c8_i32_14 : i32 to vector<16x16xi32>
    %63 = arith.cmpi sge, %44, %62 : vector<16x16xi32>
    %c16_i32_15 = arith.constant 16 : i32
    %64 = vector.broadcast %c16_i32_15 : i32 to vector<16x16xi32>
    %65 = arith.cmpi slt, %44, %64 : vector<16x16xi32>
    %66 = arith.andi %63, %65 : vector<16x16xi1>
    %67 = arith.andi %61, %66 : vector<16x16xi1>
    %68 = arith.ori %56, %67 : vector<16x16xi1>
    %69 = arith.andi %45, %68 : vector<16x16xi1>
    %cst_16 = arith.constant dense<true> : vector<16x16xi1>
    %70 = arith.xori %69, %cst_16 : vector<16x16xi1>
    %cst_17 = arith.constant 0.000000e+00 : f32
    %71 = vector.broadcast %cst_17 : f32 to vector<16x32xf32>
    %72 = vector.extract_strided_slice %40 {offsets = [0, 0], sizes = [16, 8], strides = [1, 1]} : vector<16x32xf32> to vector<16x8xf32>
    %73 = vector.extract_strided_slice %41 {offsets = [0, 0], sizes = [16, 8], strides = [1, 1]} : vector<16x32xf32> to vector<16x8xf32>
    %cst_18 = arith.constant dense<0.000000e+00> : vector<16x16xf32>
    %74 = tpu.matmul %72, %73, %cst_18 {dimension_numbers = #tpu.dot_dimension_numbers<[1], [1], [0], [0], [0, 0, 1, 0], [], []>} : vector<16x8xf32>, vector<16x8xf32>, vector<16x16xf32> -> vector<16x16xf32>
    %cst_19 = arith.constant -1.000000e+30 : f32
    %75 = vector.broadcast %cst_19 : f32 to vector<16x16xf32>
    %76 = arith.select %70, %75, %74 : vector<16x16xi1>, vector<16x16xf32>
    %cst_20 = arith.constant dense<0xFF800000> : vector<16xf32>
    %77 = vector.multi_reduction <maximumf>, %76, %cst_20 [1] : vector<16x16xf32> to vector<16xf32>
    %78 = vector.shape_cast %77 : vector<16xf32> to vector<16x1xf32>
    %79 = vector.broadcast %78 : vector<16x1xf32> to vector<16x16xf32>
    %80 = arith.subf %76, %79 : vector<16x16xf32>
    %81 = math.exp %80 : vector<16x16xf32>
    %cst_21 = arith.constant dense<0.000000e+00> : vector<16xf32>
    %82 = vector.multi_reduction <add>, %81, %cst_21 [1] : vector<16x16xf32> to vector<16xf32>
    %83 = vector.shape_cast %82 : vector<16xf32> to vector<16x1xf32>
    %84 = vector.broadcast %83 : vector<16x1xf32> to vector<16x16xf32>
    %85 = arith.divf %81, %84 : vector<16x16xf32>
    %86 = vector.extract_strided_slice %42 {offsets = [0, 0], sizes = [16, 8], strides = [1, 1]} : vector<16x32xf32> to vector<16x8xf32>
    %cst_22 = arith.constant dense<0.000000e+00> : vector<16x8xf32>
    %87 = tpu.matmul %85, %86, %cst_22 {dimension_numbers = #tpu.dot_dimension_numbers<[1], [0], [0], [1], [0, 0, 1, 1], [], []>} : vector<16x16xf32>, vector<16x8xf32>, vector<16x8xf32> -> vector<16x8xf32>
    %88 = vector.extract_strided_slice %12 {offsets = [0, 0], sizes = [8, 32], strides = [1, 1]} : vector<32x32xf32> to vector<8x32xf32>
    %cst_23 = arith.constant dense<0.000000e+00> : vector<16x32xf32>
    %89 = tpu.matmul %87, %88, %cst_23 {dimension_numbers = #tpu.dot_dimension_numbers<[1], [0], [0], [1], [0, 0, 1, 1], [], []>} : vector<16x8xf32>, vector<8x32xf32>, vector<16x32xf32> -> vector<16x32xf32>
    %90 = arith.addf %71, %89 : vector<16x32xf32>
    %91 = vector.extract_strided_slice %40 {offsets = [0, 8], sizes = [16, 8], strides = [1, 1]} : vector<16x32xf32> to vector<16x8xf32>
    %92 = vector.extract_strided_slice %41 {offsets = [0, 8], sizes = [16, 8], strides = [1, 1]} : vector<16x32xf32> to vector<16x8xf32>
    %cst_24 = arith.constant dense<0.000000e+00> : vector<16x16xf32>
    %93 = tpu.matmul %91, %92, %cst_24 {dimension_numbers = #tpu.dot_dimension_numbers<[1], [1], [0], [0], [0, 0, 1, 0], [], []>} : vector<16x8xf32>, vector<16x8xf32>, vector<16x16xf32> -> vector<16x16xf32>
    %cst_25 = arith.constant -1.000000e+30 : f32
    %94 = vector.broadcast %cst_25 : f32 to vector<16x16xf32>
    %95 = arith.select %70, %94, %93 : vector<16x16xi1>, vector<16x16xf32>
    %cst_26 = arith.constant dense<0xFF800000> : vector<16xf32>
    %96 = vector.multi_reduction <maximumf>, %95, %cst_26 [1] : vector<16x16xf32> to vector<16xf32>
    %97 = vector.shape_cast %96 : vector<16xf32> to vector<16x1xf32>
    %98 = vector.broadcast %97 : vector<16x1xf32> to vector<16x16xf32>
    %99 = arith.subf %95, %98 : vector<16x16xf32>
    %100 = math.exp %99 : vector<16x16xf32>
    %cst_27 = arith.constant dense<0.000000e+00> : vector<16xf32>
    %101 = vector.multi_reduction <add>, %100, %cst_27 [1] : vector<16x16xf32> to vector<16xf32>
    %102 = vector.shape_cast %101 : vector<16xf32> to vector<16x1xf32>
    %103 = vector.broadcast %102 : vector<16x1xf32> to vector<16x16xf32>
    %104 = arith.divf %100, %103 : vector<16x16xf32>
    %105 = vector.extract_strided_slice %42 {offsets = [0, 8], sizes = [16, 8], strides = [1, 1]} : vector<16x32xf32> to vector<16x8xf32>
    %cst_28 = arith.constant dense<0.000000e+00> : vector<16x8xf32>
    %106 = tpu.matmul %104, %105, %cst_28 {dimension_numbers = #tpu.dot_dimension_numbers<[1], [0], [0], [1], [0, 0, 1, 1], [], []>} : vector<16x16xf32>, vector<16x8xf32>, vector<16x8xf32> -> vector<16x8xf32>
    %107 = vector.extract_strided_slice %12 {offsets = [8, 0], sizes = [8, 32], strides = [1, 1]} : vector<32x32xf32> to vector<8x32xf32>
    %cst_29 = arith.constant dense<0.000000e+00> : vector<16x32xf32>
    %108 = tpu.matmul %106, %107, %cst_29 {dimension_numbers = #tpu.dot_dimension_numbers<[1], [0], [0], [1], [0, 0, 1, 1], [], []>} : vector<16x8xf32>, vector<8x32xf32>, vector<16x32xf32> -> vector<16x32xf32>
    %109 = arith.addf %90, %108 : vector<16x32xf32>
    %110 = vector.extract_strided_slice %40 {offsets = [0, 16], sizes = [16, 8], strides = [1, 1]} : vector<16x32xf32> to vector<16x8xf32>
    %111 = vector.extract_strided_slice %41 {offsets = [0, 16], sizes = [16, 8], strides = [1, 1]} : vector<16x32xf32> to vector<16x8xf32>
    %cst_30 = arith.constant dense<0.000000e+00> : vector<16x16xf32>
    %112 = tpu.matmul %110, %111, %cst_30 {dimension_numbers = #tpu.dot_dimension_numbers<[1], [1], [0], [0], [0, 0, 1, 0], [], []>} : vector<16x8xf32>, vector<16x8xf32>, vector<16x16xf32> -> vector<16x16xf32>
    %cst_31 = arith.constant -1.000000e+30 : f32
    %113 = vector.broadcast %cst_31 : f32 to vector<16x16xf32>
    %114 = arith.select %70, %113, %112 : vector<16x16xi1>, vector<16x16xf32>
    %cst_32 = arith.constant dense<0xFF800000> : vector<16xf32>
    %115 = vector.multi_reduction <maximumf>, %114, %cst_32 [1] : vector<16x16xf32> to vector<16xf32>
    %116 = vector.shape_cast %115 : vector<16xf32> to vector<16x1xf32>
    %117 = vector.broadcast %116 : vector<16x1xf32> to vector<16x16xf32>
    %118 = arith.subf %114, %117 : vector<16x16xf32>
    %119 = math.exp %118 : vector<16x16xf32>
    %cst_33 = arith.constant dense<0.000000e+00> : vector<16xf32>
    %120 = vector.multi_reduction <add>, %119, %cst_33 [1] : vector<16x16xf32> to vector<16xf32>
    %121 = vector.shape_cast %120 : vector<16xf32> to vector<16x1xf32>
    %122 = vector.broadcast %121 : vector<16x1xf32> to vector<16x16xf32>
    %123 = arith.divf %119, %122 : vector<16x16xf32>
    %124 = vector.extract_strided_slice %42 {offsets = [0, 16], sizes = [16, 8], strides = [1, 1]} : vector<16x32xf32> to vector<16x8xf32>
    %cst_34 = arith.constant dense<0.000000e+00> : vector<16x8xf32>
    %125 = tpu.matmul %123, %124, %cst_34 {dimension_numbers = #tpu.dot_dimension_numbers<[1], [0], [0], [1], [0, 0, 1, 1], [], []>} : vector<16x16xf32>, vector<16x8xf32>, vector<16x8xf32> -> vector<16x8xf32>
    %126 = vector.extract_strided_slice %12 {offsets = [16, 0], sizes = [8, 32], strides = [1, 1]} : vector<32x32xf32> to vector<8x32xf32>
    %cst_35 = arith.constant dense<0.000000e+00> : vector<16x32xf32>
    %127 = tpu.matmul %125, %126, %cst_35 {dimension_numbers = #tpu.dot_dimension_numbers<[1], [0], [0], [1], [0, 0, 1, 1], [], []>} : vector<16x8xf32>, vector<8x32xf32>, vector<16x32xf32> -> vector<16x32xf32>
    %128 = arith.addf %109, %127 : vector<16x32xf32>
    %129 = vector.extract_strided_slice %40 {offsets = [0, 24], sizes = [16, 8], strides = [1, 1]} : vector<16x32xf32> to vector<16x8xf32>
    %130 = vector.extract_strided_slice %41 {offsets = [0, 24], sizes = [16, 8], strides = [1, 1]} : vector<16x32xf32> to vector<16x8xf32>
    %cst_36 = arith.constant dense<0.000000e+00> : vector<16x16xf32>
    %131 = tpu.matmul %129, %130, %cst_36 {dimension_numbers = #tpu.dot_dimension_numbers<[1], [1], [0], [0], [0, 0, 1, 0], [], []>} : vector<16x8xf32>, vector<16x8xf32>, vector<16x16xf32> -> vector<16x16xf32>
    %cst_37 = arith.constant -1.000000e+30 : f32
    %132 = vector.broadcast %cst_37 : f32 to vector<16x16xf32>
    %133 = arith.select %70, %132, %131 : vector<16x16xi1>, vector<16x16xf32>
    %cst_38 = arith.constant dense<0xFF800000> : vector<16xf32>
    %134 = vector.multi_reduction <maximumf>, %133, %cst_38 [1] : vector<16x16xf32> to vector<16xf32>
    %135 = vector.shape_cast %134 : vector<16xf32> to vector<16x1xf32>
    %136 = vector.broadcast %135 : vector<16x1xf32> to vector<16x16xf32>
    %137 = arith.subf %133, %136 : vector<16x16xf32>
    %138 = math.exp %137 : vector<16x16xf32>
    %cst_39 = arith.constant dense<0.000000e+00> : vector<16xf32>
    %139 = vector.multi_reduction <add>, %138, %cst_39 [1] : vector<16x16xf32> to vector<16xf32>
    %140 = vector.shape_cast %139 : vector<16xf32> to vector<16x1xf32>
    %141 = vector.broadcast %140 : vector<16x1xf32> to vector<16x16xf32>
    %142 = arith.divf %138, %141 : vector<16x16xf32>
    %143 = vector.extract_strided_slice %42 {offsets = [0, 24], sizes = [16, 8], strides = [1, 1]} : vector<16x32xf32> to vector<16x8xf32>
    %cst_40 = arith.constant dense<0.000000e+00> : vector<16x8xf32>
    %144 = tpu.matmul %142, %143, %cst_40 {dimension_numbers = #tpu.dot_dimension_numbers<[1], [0], [0], [1], [0, 0, 1, 1], [], []>} : vector<16x16xf32>, vector<16x8xf32>, vector<16x8xf32> -> vector<16x8xf32>
    %145 = vector.extract_strided_slice %12 {offsets = [24, 0], sizes = [8, 32], strides = [1, 1]} : vector<32x32xf32> to vector<8x32xf32>
    %cst_41 = arith.constant dense<0.000000e+00> : vector<16x32xf32>
    %146 = tpu.matmul %144, %145, %cst_41 {dimension_numbers = #tpu.dot_dimension_numbers<[1], [0], [0], [1], [0, 0, 1, 1], [], []>} : vector<16x8xf32>, vector<8x32xf32>, vector<16x32xf32> -> vector<16x32xf32>
    %147 = arith.addf %128, %146 : vector<16x32xf32>
    %148 = arith.addf %0, %147 : vector<16x32xf32>
    %149 = vector.broadcast %5 : vector<1x32xf32> to vector<16x32xf32>
    %150 = arith.addf %148, %149 : vector<16x32xf32>
    %cst_42 = arith.constant dense<0.000000e+00> : vector<16xf32>
    %151 = vector.multi_reduction <add>, %150, %cst_42 [1] : vector<16x32xf32> to vector<16xf32>
    %152 = vector.shape_cast %151 : vector<16xf32> to vector<16x1xf32>
    %cst_43 = arith.constant 3.200000e+01 : f32
    %153 = vector.broadcast %cst_43 : f32 to vector<16x1xf32>
    %154 = arith.divf %152, %153 : vector<16x1xf32>
    %155 = vector.broadcast %154 : vector<16x1xf32> to vector<16x32xf32>
    %156 = arith.subf %150, %155 : vector<16x32xf32>
    %157 = arith.mulf %156, %156 : vector<16x32xf32>
    %cst_44 = arith.constant dense<0.000000e+00> : vector<16xf32>
    %158 = vector.multi_reduction <add>, %157, %cst_44 [1] : vector<16x32xf32> to vector<16xf32>
    %159 = vector.shape_cast %158 : vector<16xf32> to vector<16x1xf32>
    %cst_45 = arith.constant 3.200000e+01 : f32
    %160 = vector.broadcast %cst_45 : f32 to vector<16x1xf32>
    %161 = arith.divf %159, %160 : vector<16x1xf32>
    %162 = vector.broadcast %154 : vector<16x1xf32> to vector<16x32xf32>
    %163 = arith.subf %150, %162 : vector<16x32xf32>
    %cst_46 = arith.constant 9.99999974E-6 : f32
    %164 = vector.broadcast %cst_46 : f32 to vector<16x1xf32>
    %165 = arith.addf %161, %164 : vector<16x1xf32>
    %166 = math.sqrt %165 : vector<16x1xf32>
    %167 = vector.broadcast %166 : vector<16x1xf32> to vector<16x32xf32>
    %168 = arith.divf %163, %167 : vector<16x32xf32>
    %169 = vector.broadcast %6 : vector<1x32xf32> to vector<16x32xf32>
    %170 = arith.mulf %168, %169 : vector<16x32xf32>
    %171 = vector.broadcast %7 : vector<1x32xf32> to vector<16x32xf32>
    %172 = arith.addf %170, %171 : vector<16x32xf32>
    %c0_47 = arith.constant 0 : index
    %c0_48 = arith.constant 0 : index
    %173 = vector.load %arg2[%c0_47, %c0_48] : memref<32x128xf32, #tpu.memory_space<vmem>>, vector<32x128xf32>
    %cst_49 = arith.constant dense<0.000000e+00> : vector<16x128xf32>
    %174 = tpu.matmul %172, %173, %cst_49 {dimension_numbers = #tpu.dot_dimension_numbers<[1], [0], [0], [1], [0, 0, 1, 1], [], []>} : vector<16x32xf32>, vector<32x128xf32>, vector<16x128xf32> -> vector<16x128xf32>
    %175 = vector.broadcast %8 : vector<1x128xf32> to vector<16x128xf32>
    %176 = arith.addf %174, %175 : vector<16x128xf32>
    %cst_50 = arith.constant 5.000000e-01 : f32
    %177 = vector.broadcast %cst_50 : f32 to vector<16x128xf32>
    %178 = arith.mulf %177, %176 : vector<16x128xf32>
    %cst_51 = arith.constant 0.636619746 : f32
    %179 = math.sqrt %cst_51 : f32
    %cst_52 = arith.constant 4.471500e-02 : f32
    %180 = vector.broadcast %cst_52 : f32 to vector<16x128xf32>
    %181 = arith.mulf %180, %176 : vector<16x128xf32>
    %182 = arith.mulf %181, %176 : vector<16x128xf32>
    %183 = arith.mulf %182, %176 : vector<16x128xf32>
    %184 = arith.addf %176, %183 : vector<16x128xf32>
    %185 = vector.broadcast %179 : f32 to vector<16x128xf32>
    %186 = arith.mulf %185, %184 : vector<16x128xf32>
    %187 = math.tanh %186 : vector<16x128xf32>
    %cst_53 = arith.constant 1.000000e+00 : f32
    %188 = vector.broadcast %cst_53 : f32 to vector<16x128xf32>
    %189 = arith.addf %188, %187 : vector<16x128xf32>
    %190 = arith.mulf %178, %189 : vector<16x128xf32>
    %c0_54 = arith.constant 0 : index
    %c0_55 = arith.constant 0 : index
    %191 = vector.load %arg3[%c0_54, %c0_55] : memref<128x32xf32, #tpu.memory_space<vmem>>, vector<128x32xf32>
    %cst_56 = arith.constant dense<0.000000e+00> : vector<16x32xf32>
    %192 = tpu.matmul %190, %191, %cst_56 {dimension_numbers = #tpu.dot_dimension_numbers<[1], [0], [0], [1], [0, 0, 1, 1], [], []>} : vector<16x128xf32>, vector<128x32xf32>, vector<16x32xf32> -> vector<16x32xf32>
    %193 = vector.broadcast %9 : vector<1x32xf32> to vector<16x32xf32>
    %194 = arith.addf %192, %193 : vector<16x32xf32>
    %195 = arith.addf %150, %194 : vector<16x32xf32>
    %c0_57 = arith.constant 0 : index
    %c0_58 = arith.constant 0 : index
    %196 = vector.load %arg5[%c0_57, %c0_58] : memref<16x32xf32, #tpu.memory_space<vmem>>, vector<16x32xf32>
    tpu.vector_store %arg5[%c0_57, %c0_58], %195 {strides = array<i32>} : memref<16x32xf32, #tpu.memory_space<vmem>>, vector<16x32xf32>,
    return
  }
}

</mosaic_0001>

<llo_original>
// kernel: tpu_custom_call.1
$region0: #{tpu_custom_call.1}
  #allocation0 [shape = 'u32[]', space=smem, size = 0x4, offset = 0x4, fixed_abs, tag = 'smem constant byte address 0x4 - core index']
  #allocation1 [shape = 'u32[144,128]{1,0:T(1,128)}', space=vmem, size = 0x12000, scoped, tag = 'internal scratch']
  %s0 = inlined_call_operand.vmem [shape: f32[16,32], index: 0, kind: input, shape index: {}]
  %s1 = inlined_call_operand.vmem [shape: f32[32,128], index: 1, kind: input, shape index: {}]
  %s2 = inlined_call_operand.vmem [shape: f32[32,128], index: 2, kind: input, shape index: {}]
  %s3 = inlined_call_operand.vmem [shape: f32[128,32], index: 3, kind: input, shape index: {}]
  %s4 = inlined_call_operand.vmem [shape: f32[8,128], index: 4, kind: input, shape index: {}]
  %s5 = inlined_call_operand.hbm [shape: f32[16,32], index: 5, kind: output, shape index: {}]
  %s6 = sld [smem:[#allocation0]]
  $region30: #{tpu_custom_call.1} parent=0
    _
  %s8 = ssub.s32 1, %s6
  %s9 = scalar_select 0, %s8, %s6
  $region1: #{tpu_custom_call.1} parent=0
    #allocation2 [shape = 'u8[8192]{0}', space=vmem, size = 0x2000, scoped, tag = 'output window, operand 0, single buffered']
    #allocation3 [shape = 's32[1]{0}', space=sflag, size = 0x4, scoped, tag = 'scoped memory for tpu_custom_call.1']
    %10 = vsyncpa [#allocation3], 0
    // Predicated region
    $region2: #{tpu_custom_call.1} parent=1 // pred_check
      _
    $region3: #{tpu_custom_call.1} parent=1 // pred_check_branch
      %12 = sbr.rel (0) target = $region5
    $region4: #{tpu_custom_call.1} parent=1 // pred_region
      _
    $region5: #{tpu_custom_call.1} parent=1 // pred_fallthru
      _
    // Predicated region
    $region6: #{tpu_custom_call.1} parent=1 // pred_check
      _
    $region7: #{tpu_custom_call.1} parent=1 // pred_check_branch
      %14 = sbr.rel (0) target = $region9
    $region8: #{tpu_custom_call.1} parent=1 // pred_region
      _
    $region9: #{tpu_custom_call.1} parent=1 // pred_fallthru
      _
    // Predicated region
    $region10: #{tpu_custom_call.1} parent=1 // pred_check
      _
    $region11: #{tpu_custom_call.1} parent=1 // pred_check_branch
      %16 = sbr.rel (0) target = $region13
    $region12: #{tpu_custom_call.1} parent=1 // pred_region
      _
    $region13: #{tpu_custom_call.1} parent=1 // pred_fallthru
      _
    // Predicated region
    $region14: #{tpu_custom_call.1} parent=1 // pred_check
      _
    $region15: #{tpu_custom_call.1} parent=1 // pred_check_branch
      %18 = sbr.rel (0) target = $region17
    $region16: #{tpu_custom_call.1} parent=1 // pred_region
      _
    $region17: #{tpu_custom_call.1} parent=1 // pred_fallthru
      _
    // Predicated region
    $region18: #{tpu_custom_call.1} parent=1 // pred_check
      _
    $region19: #{tpu_custom_call.1} parent=1 // pred_check_branch
      %20 = sbr.rel (0) target = $region21
    $region20: #{tpu_custom_call.1} parent=1 // pred_region
      _
    $region21: #{tpu_custom_call.1} parent=1 // pred_fallthru
      _
    %v21 = vld [vmem:[%s0] sm:$0xff]
    %v22 = vld [vmem:[%s0 + $0x8] sm:$0xff]
    %v23 = vld [vmem:[%s4] sm:$0xff]
    %v24 = vld [vmem:[%s1] sm:$0xff]
    %v25 = vld [vmem:[%s1 + $0x8] sm:$0xff]
    %v26 = vld [vmem:[%s1 + $0x10] sm:$0xff]
    %v27 = vld [vmem:[%s1 + $0x18] sm:$0xff]
    %vm28 = vcmask 261120
    %v29 = vsel %vm28, %v21, 0.0
    %30 = vadd.xlane.f32.xlu0 %v29
    %v31 = vpop.xlane.xlu0 %30
    %v32 = vsel %vm28, %v22, 0.0
    %33 = vadd.xlane.f32.xlu0 %v32
    %v34 = vpop.xlane.xlu0 %33
    %v35 = vrcp.pop 32.0
    %v36 = vmul.f32 %v31, %v35
    %v37 = vmul.f32 %v34, %v35
    %v38 = vsub.f32 %v21, %v36
    %v39 = vsub.f32 %v22, %v37
    %v40 = vmul.f32 %v38, %v38
    %v41 = vmul.f32 %v39, %v39
    %v42 = vsel %vm28, %v40, 0.0
    %43 = vadd.xlane.f32.xlu0 %v42
    %v44 = vpop.xlane.xlu0 %43
    %v45 = vsel %vm28, %v41, 0.0
    %46 = vadd.xlane.f32.xlu0 %v45
    %v47 = vpop.xlane.xlu0 %46
    %v48 = vmul.f32 %v44, %v35
    %v49 = vmul.f32 %v47, %v35
    %v50 = vadd.f32 %v48, 1e-05
    %v51 = vadd.f32 %v49, 1e-05
    %v52 = vrsqrt.pop %v50
    %v53 = vmul.f32 %v50, %v52
    %vm54 = vcmp.eq.f32.partialorder %v50, inf
    %v55 = vsel %vm54, %v50, %v53
    %vm56 = vcmp.eq.f32.partialorder %v50, 0.0
    %v57 = vand.u32 %v50, 2147483648
    %v58 = vsel %vm56, %v57, %v55
    %v59 = vrsqrt.pop %v51
    %v60 = vmul.f32 %v51, %v59
    %vm61 = vcmp.eq.f32.partialorder %v51, inf
    %v62 = vsel %vm61, %v51, %v60
    %vm63 = vcmp.eq.f32.partialorder %v51, 0.0
    %v64 = vand.u32 %v51, 2147483648
    %v65 = vsel %vm63, %v64, %v62
    %v66 = vrcp.pop %v58
    %v67 = vmul.f32 %v38, %v66
    %v68 = vrcp.pop %v65
    %v69 = vmul.f32 %v39, %v68
    %v70 = vlaneseq
    %v71 = vshrl.u32 %v70, 7
    %v72 = vsub.s32 0, %v71
    %v73 = vrot.slane %v23, %v72
    %v74 = vmul.f32 %v67, %v73
    %v75 = vmul.f32 %v69, %v73
    %v76 = vlaneseq
    %v77 = vshrl.u32 %v76, 7
    %v78 = vsub.s32 1, %v77
    %v79 = vrot.slane %v23, %v78
    %v80 = vadd.f32 %v74, %v79
    %v81 = vadd.f32 %v75, %v79
    %v82 = vlaneseq
    %v83 = vshrl.u32 %v82, 7
    %v84 = vsub.s32 2, %v83
    %v85 = vrot.slane %v23, %v84
    %v87 = vsel %vm28, %v80, 0
    %v90 = vsel %vm28, %v81, 0
    %92 = vmatprep.subr.mxu0 0.0
    %93 = vmatpush1.msra.mxu0 %v24
    %94 = vmatprep.subr.mxu0 0.0
    %95 = vmatpush1.msra.mxu0 %v25
    %96 = vmatprep.subr.mxu0 0.0
    %97 = vmatpush1.msra.mxu0 %v26
    %98 = vmatprep.subr.mxu0 0.0
    %99 = vmatpush1.msra.mxu0 %v27
    %100 = vmatprep.subr.mxu0 0.0
    %101 = vmatpush1.msra.mxu0 0.0
    %102 = vmatprep.subr.mxu0 0.0
    %103 = vmatpush1.msra.mxu0 0.0
    %104 = vmatprep.subr.mxu0 0.0
    %105 = vmatpush1.msra.mxu0 0.0
    %106 = vmatprep.subr.mxu0 0.0
    %107 = vmatpush1.msra.mxu0 0.0
    %108 = vmatprep.subr.mxu0 0.0
    %109 = vmatpush1.msra.mxu0 0.0
    %110 = vmatprep.subr.mxu0 0.0
    %111 = vmatpush1.msra.mxu0 0.0
    %112 = vmatprep.subr.mxu0 0.0
    %113 = vmatpush1.msra.mxu0 0.0
    %114 = vmatprep.subr.mxu0 0.0
    %115 = vmatpush1.msra.mxu0 0.0
    %116 = vmatprep.subr.mxu0 0.0
    %117 = vmatpush1.msra.mxu0 0.0
    %118 = vmatprep.subr.mxu0 0.0
    %119 = vmatpush1.msra.mxu0 0.0
    %120 = vmatprep.subr.mxu0 0.0
    %121 = vmatpush1.msra.mxu0 0.0
    %122 = vmatprep.subr.mxu0 0.0
    %123 = vmatpush1.msra.mxu0 0.0
    %124 = vmatprep.subr.mxu0 0.0
    %125 = vmatpush1.msra.mxu0 0.0
    %126 = vmatprep.subr.mxu0 0.0
    %127 = vmatpush1.msra.mxu0 0.0
    %128 = vmatprep.subr.mxu0 0.0
    %129 = vmatpush1.msra.mxu0 0.0
    %130 = vmatprep.subr.mxu0 0.0
    %131 = vmatpush1.msra.mxu0 0.0
    %132 = vmatprep.subr.mxu0 0.0
    %133 = vmatpush1.msra.mxu0 0.0
    %134 = vmatprep.subr.mxu0 0.0
    %135 = vmatpush1.msra.mxu0 0.0
    %136 = vmatprep.subr.mxu0 0.0
    %137 = vmatpush1.msra.mxu0 0.0
    %138 = vmatprep.subr.mxu0 0.0
    %139 = vmatpush1.msra.mxu0 0.0
    %140 = vmatprep.subr.mxu0 0.0
    %141 = vmatpush1.msra.mxu0 0.0
    %142 = vmatprep.subr.mxu0 0.0
    %143 = vmatpush1.msra.mxu0 0.0
    %144 = vmatprep.subr.mxu0 0.0
    %145 = vmatpush1.msra.mxu0 0.0
    %146 = vmatprep.subr.mxu0 0.0
    %147 = vmatpush1.msra.mxu0 0.0
    %148 = vmatprep.subr.mxu0 0.0
    %149 = vmatpush1.msra.mxu0 0.0
    %150 = vmatprep.subr.mxu0 0.0
    %151 = vmatpush1.msra.mxu0 0.0
    %152 = vmatprep.subr.mxu0 0.0
    %153 = vmatpush1.msra.mxu0 0.0
    %154 = vmatprep.subr.mxu0 0.0
    %155 = vmatpush1.msra.mxu0 0.0
    %156 = vmatprep.mubr.f32.mxu0 0.0
    %157 = vmatmul.mubr.f32.gmra.mrb[0].mxu0 %v87
    %v158 = vpop.f32.mrb[0].mxu0
    %v159 = vadd.f32 %v85, %v158
    %v160 = vpop.f32.mrb[0].mxu0
    %161 = vmatprep.mubr.f32.mxu0 0.0
    %162 = vmatmul.mubr.f32.gmra.mrb[0].mxu0 %v90
    %v163 = vpop.f32.mrb[0].mxu0
    %v164 = vadd.f32 %v85, %v163
    %v165 = vpop.f32.mrb[0].mxu0
    %166 = vdwg.mxu0
    %v167 = vmul.f32 %v159, 0.35355338
    %v168 = vmul.f32 %v164, 0.35355338
    %v169 = vlaneseq
    %v170 = vshrl.u32 %v169, 7
    %v171 = vadd.s32 %v170, 8
    %v172 = vlaneseq
    %v173 = vand.u32 %v172, 127
    %vm174 = vcmp.le.s32.totalorder %v173, %v170
    %vm175 = vcmp.le.s32.totalorder %v173, %v171
    %vm176 = vcmp.ge.s32.totalorder %v170, 0
    %vm177 = vcmp.ge.s32.totalorder %v171, 0
    %vm178 = vcmp.lt.s32.totalorder %v170, 8
    %vm179 = vcmp.lt.s32.totalorder %v171, 8
    %vm180 = vmand %vm176, %vm178
    %vm181 = vmand %vm177, %vm179
    %vm182 = vcmp.ge.s32.totalorder %v173, 0
    %vm183 = vcmp.lt.s32.totalorder %v173, 8
    %vm184 = vmand %vm182, %vm183
    %vm185 = vmand %vm180, %vm184
    %vm186 = vmand %vm181, %vm184
    %vm187 = vcmp.ge.s32.totalorder %v170, 8
    %vm188 = vcmp.ge.s32.totalorder %v171, 8
    %vm189 = vcmp.lt.s32.totalorder %v170, 16
    %vm190 = vcmp.lt.s32.totalorder %v171, 16
    %vm191 = vmand %vm187, %vm189
    %vm192 = vmand %vm188, %vm190
    %vm193 = vcmp.ge.s32.totalorder %v173, 8
    %vm194 = vcmp.lt.s32.totalorder %v173, 16
    %vm195 = vmand %vm193, %vm194
    %vm196 = vmand %vm191, %vm195
    %vm197 = vmand %vm192, %vm195
    %vm198 = vmor %vm185, %vm196
    %vm199 = vmor %vm186, %vm197
    %vm200 = vmand %vm174, %vm198
    %vm201 = vmand %vm175, %vm199
    %vm202 = vmxor %vm200, 1
    %vm203 = vmxor %vm201, 1
    %206 = vrot.lane.b32.xlu0 %v159, 96
    %v207 = vpop.permute.xlu0 %206
    %208 = vrot.lane.b32.xlu0 %v164, 96
    %v209 = vpop.permute.xlu0 %208
    %vm210 = vcmask 64512
    %v212 = vsel %vm210, %v167, 0
    %v215 = vsel %vm210, %v168, 0
    %v217 = vsel %vm210, %v207, 0
    %v219 = vsel %vm210, %v209, 0
    %221 = vmatprep.subr.mxu0 0.0
    %222 = vmatpush1.xpose.msra.mxu0 %v217
    %223 = vmatprep.subr.mxu0 0.0
    %224 = vmatpush1.xpose.msra.mxu0 %v219
    %225 = vmatprep.subr.mxu0 0.0
    %226 = vmatpush1.xpose.msra.mxu0 0.0
    %227 = vmatprep.subr.mxu0 0.0
    %228 = vmatpush1.xpose.msra.mxu0 0.0
    %229 = vmatprep.subr.mxu0 0.0
    %230 = vmatpush1.xpose.msra.mxu0 0.0
    %231 = vmatprep.subr.mxu0 0.0
    %232 = vmatpush1.xpose.msra.mxu0 0.0
    %233 = vmatprep.subr.mxu0 0.0
    %234 = vmatpush1.xpose.msra.mxu0 0.0
    %235 = vmatprep.subr.mxu0 0.0
    %236 = vmatpush1.xpose.msra.mxu0 0.0
    %237 = vmatprep.subr.mxu0 0.0
    %238 = vmatpush1.xpose.msra.mxu0 0.0
    %239 = vmatprep.subr.mxu0 0.0
    %240 = vmatpush1.xpose.msra.mxu0 0.0
    %241 = vmatprep.subr.mxu0 0.0
    %242 = vmatpush1.xpose.msra.mxu0 0.0
    %243 = vmatprep.subr.mxu0 0.0
    %244 = vmatpush1.xpose.msra.mxu0 0.0
    %245 = vmatprep.subr.mxu0 0.0
    %246 = vmatpush1.xpose.msra.mxu0 0.0
    %247 = vmatprep.subr.mxu0 0.0
    %248 = vmatpush1.xpose.msra.mxu0 0.0
    %249 = vmatprep.subr.mxu0 0.0
    %250 = vmatpush1.xpose.msra.mxu0 0.0
    %251 = vmatprep.subr.mxu0 0.0
    %252 = vmatpush1.xpose.msra.mxu0 0.0
    %253 = vmatprep.subr.mxu0 0.0
    %254 = vmatpush1.xpose.msra.mxu0 0.0
    %255 = vmatprep.subr.mxu0 0.0
    %256 = vmatpush1.xpose.msra.mxu0 0.0
    %257 = vmatprep.subr.mxu0 0.0
    %258 = vmatpush1.xpose.msra.mxu0 0.0
    %259 = vmatprep.subr.mxu0 0.0
    %260 = vmatpush1.xpose.msra.mxu0 0.0
    %261 = vmatprep.subr.mxu0 0.0
    %262 = vmatpush1.xpose.msra.mxu0 0.0
    %263 = vmatprep.subr.mxu0 0.0
    %264 = vmatpush1.xpose.msra.mxu0 0.0
    %265 = vmatprep.subr.mxu0 0.0
    %266 = vmatpush1.xpose.msra.mxu0 0.0
    %267 = vmatprep.subr.mxu0 0.0
    %268 = vmatpush1.xpose.msra.mxu0 0.0
    %269 = vmatprep.subr.mxu0 0.0
    %270 = vmatpush1.xpose.msra.mxu0 0.0
    %271 = vmatprep.subr.mxu0 0.0
    %272 = vmatpush1.xpose.msra.mxu0 0.0
    %273 = vmatprep.subr.mxu0 0.0
    %274 = vmatpush1.xpose.msra.mxu0 0.0
    %275 = vmatprep.subr.mxu0 0.0
    %276 = vmatpush1.xpose.msra.mxu0 0.0
    %277 = vmatprep.subr.mxu0 0.0
    %278 = vmatpush1.xpose.msra.mxu0 0.0
    %279 = vmatprep.subr.mxu0 0.0
    %280 = vmatpush1.xpose.msra.mxu0 0.0
    %281 = vmatprep.subr.mxu0 0.0
    %282 = vmatpush1.xpose.msra.mxu0 0.0
    %283 = vmatprep.subr.mxu0 0.0
    %284 = vmatpush1.xpose.msra.mxu0 0.0
    %285 = vmatprep.mubr.f32.mxu0 0.0
    %286 = vmatmul.mubr.f32.gmra.mrb[0].mxu0 %v212
    %v287 = vpop.f32.mrb[0].mxu0
    %v288 = vadd.f32 0.0, %v287
    %v289 = vpop.f32.mrb[0].mxu0
    %290 = vmatprep.mubr.f32.mxu0 0.0
    %291 = vmatmul.mubr.f32.gmra.mrb[0].mxu0 %v215
    %v292 = vpop.f32.mrb[0].mxu0
    %v293 = vadd.f32 0.0, %v292
    %v294 = vpop.f32.mrb[0].mxu0
    %295 = vdwg.mxu0
    %v296 = vsel %vm202, -1e+30, %v288
    %v297 = vsel %vm203, -1e+30, %v293
    %vm298 = vcmask 130048
    %v299 = vsel %vm298, %v296, -inf
    %300 = vmax.xlane.f32.xlu0 %v299
    %v301 = vpop.xlane.xlu0 %300
    %v302 = vsel %vm298, %v297, -inf
    %303 = vmax.xlane.f32.xlu0 %v302
    %v304 = vpop.xlane.xlu0 %303
    %v305 = vsub.f32 %v296, %v301
    %v306 = vsub.f32 %v297, %v304
    %v307 = vmul.f32 %v305, 1.442695
    %v308 = vpow.pop %v307
    %v309 = vmul.f32 %v306, 1.442695
    %v310 = vpow.pop %v309
    %v311 = vsel %vm298, %v308, 0.0
    %312 = vadd.xlane.f32.xlu0 %v311
    %v313 = vpop.xlane.xlu0 %312
    %v314 = vsel %vm298, %v310, 0.0
    %315 = vadd.xlane.f32.xlu0 %v314
    %v316 = vpop.xlane.xlu0 %315
    %v317 = vrcp.pop %v313
    %v318 = vmul.f32 %v308, %v317
    %v319 = vrcp.pop %v316
    %v320 = vmul.f32 %v310, %v319
    %321 = vrot.lane.b32.xlu0 %v159, 64
    %v322 = vpop.permute.xlu0 %321
    %323 = vrot.lane.b32.xlu0 %v164, 64
    %v324 = vpop.permute.xlu0 %323
    %v328 = vsel %vm298, %v318, 0
    %v331 = vsel %vm298, %v320, 0
    %333 = vmatprep.subr.mxu0 0.0
    %334 = vmatpush1.msra.mxu0 %v322
    %335 = vmatprep.subr.mxu0 0.0
    %336 = vmatpush1.msra.mxu0 %v324
    %337 = vmatprep.subr.mxu0 0.0
    %338 = vmatpush1.msra.mxu0 0.0
    %339 = vmatprep.subr.mxu0 0.0
    %340 = vmatpush1.msra.mxu0 0.0
    %341 = vmatprep.subr.mxu0 0.0
    %342 = vmatpush1.msra.mxu0 0.0
    %343 = vmatprep.subr.mxu0 0.0
    %344 = vmatpush1.msra.mxu0 0.0
    %345 = vmatprep.subr.mxu0 0.0
    %346 = vmatpush1.msra.mxu0 0.0
    %347 = vmatprep.subr.mxu0 0.0
    %348 = vmatpush1.msra.mxu0 0.0
    %349 = vmatprep.subr.mxu0 0.0
    %350 = vmatpush1.msra.mxu0 0.0
    %351 = vmatprep.subr.mxu0 0.0
    %352 = vmatpush1.msra.mxu0 0.0
    %353 = vmatprep.subr.mxu0 0.0
    %354 = vmatpush1.msra.mxu0 0.0
    %355 = vmatprep.subr.mxu0 0.0
    %356 = vmatpush1.msra.mxu0 0.0
    %357 = vmatprep.subr.mxu0 0.0
    %358 = vmatpush1.msra.mxu0 0.0
    %359 = vmatprep.subr.mxu0 0.0
    %360 = vmatpush1.msra.mxu0 0.0
    %361 = vmatprep.subr.mxu0 0.0
    %362 = vmatpush1.msra.mxu0 0.0
    %363 = vmatprep.subr.mxu0 0.0
    %364 = vmatpush1.msra.mxu0 0.0
    %365 = vmatprep.subr.mxu0 0.0
    %366 = vmatpush1.msra.mxu0 0.0
    %367 = vmatprep.subr.mxu0 0.0
    %368 = vmatpush1.msra.mxu0 0.0
    %369 = vmatprep.subr.mxu0 0.0
    %370 = vmatpush1.msra.mxu0 0.0
    %371 = vmatprep.subr.mxu0 0.0
    %372 = vmatpush1.msra.mxu0 0.0
    %373 = vmatprep.subr.mxu0 0.0
    %374 = vmatpush1.msra.mxu0 0.0
    %375 = vmatprep.subr.mxu0 0.0
    %376 = vmatpush1.msra.mxu0 0.0
    %377 = vmatprep.subr.mxu0 0.0
    %378 = vmatpush1.msra.mxu0 0.0
    %379 = vmatprep.subr.mxu0 0.0
    %380 = vmatpush1.msra.mxu0 0.0
    %381 = vmatprep.subr.mxu0 0.0
    %382 = vmatpush1.msra.mxu0 0.0
    %383 = vmatprep.subr.mxu0 0.0
    %384 = vmatpush1.msra.mxu0 0.0
    %385 = vmatprep.subr.mxu0 0.0
    %386 = vmatpush1.msra.mxu0 0.0
    %387 = vmatprep.subr.mxu0 0.0
    %388 = vmatpush1.msra.mxu0 0.0
    %389 = vmatprep.subr.mxu0 0.0
    %390 = vmatpush1.msra.mxu0 0.0
    %391 = vmatprep.subr.mxu0 0.0
    %392 = vmatpush1.msra.mxu0 0.0
    %393 = vmatprep.subr.mxu0 0.0
    %394 = vmatpush1.msra.mxu0 0.0
    %395 = vmatprep.subr.mxu0 0.0
    %396 = vmatpush1.msra.mxu0 0.0
    %397 = vmatprep.mubr.f32.mxu0 0.0
    %398 = vmatmul.mubr.f32.gmra.mrb[0].mxu0 %v328
    %v399 = vpop.f32.mrb[0].mxu0
    %v400 = vadd.f32 0.0, %v399
    %v401 = vpop.f32.mrb[0].mxu0
    %402 = vmatprep.mubr.f32.mxu0 0.0
    %403 = vmatmul.mubr.f32.gmra.mrb[0].mxu0 %v331
    %v404 = vpop.f32.mrb[0].mxu0
    %v405 = vadd.f32 0.0, %v404
    %v406 = vpop.f32.mrb[0].mxu0
    %407 = vdwg.mxu0
    %408 = vrot.lane.b32.xlu0 %v167, 120
    %v409 = vpop.permute.xlu0 %408
    %410 = vrot.lane.b32.xlu0 %v168, 120
    %v411 = vpop.permute.xlu0 %410
    %412 = vrot.lane.b32.xlu0 %v159, 88
    %v413 = vpop.permute.xlu0 %412
    %414 = vrot.lane.b32.xlu0 %v164, 88
    %v415 = vpop.permute.xlu0 %414
    %v416 = vsel %vm210, %v409, 0
    %v418 = vsel %vm210, %v411, 0
    %v420 = vsel %vm210, %v413, 0
    %v422 = vsel %vm210, %v415, 0
    %424 = vmatprep.subr.mxu0 0.0
    %425 = vmatpush1.xpose.msra.mxu0 %v420
    %426 = vmatprep.subr.mxu0 0.0
    %427 = vmatpush1.xpose.msra.mxu0 %v422
    %428 = vmatprep.subr.mxu0 0.0
    %429 = vmatpush1.xpose.msra.mxu0 0.0
    %430 = vmatprep.subr.mxu0 0.0
    %431 = vmatpush1.xpose.msra.mxu0 0.0
    %432 = vmatprep.subr.mxu0 0.0
    %433 = vmatpush1.xpose.msra.mxu0 0.0
    %434 = vmatprep.subr.mxu0 0.0
    %435 = vmatpush1.xpose.msra.mxu0 0.0
    %436 = vmatprep.subr.mxu0 0.0
    %437 = vmatpush1.xpose.msra.mxu0 0.0
    %438 = vmatprep.subr.mxu0 0.0
    %439 = vmatpush1.xpose.msra.mxu0 0.0
    %440 = vmatprep.subr.mxu0 0.0
    %441 = vmatpush1.xpose.msra.mxu0 0.0
    %442 = vmatprep.subr.mxu0 0.0
    %443 = vmatpush1.xpose.msra.mxu0 0.0
    %444 = vmatprep.subr.mxu0 0.0
    %445 = vmatpush1.xpose.msra.mxu0 0.0
    %446 = vmatprep.subr.mxu0 0.0
    %447 = vmatpush1.xpose.msra.mxu0 0.0
    %448 = vmatprep.subr.mxu0 0.0
    %449 = vmatpush1.xpose.msra.mxu0 0.0
    %450 = vmatprep.subr.mxu0 0.0
    %451 = vmatpush1.xpose.msra.mxu0 0.0
    %452 = vmatprep.subr.mxu0 0.0
    %453 = vmatpush1.xpose.msra.mxu0 0.0
    %454 = vmatprep.subr.mxu0 0.0
    %455 = vmatpush1.xpose.msra.mxu0 0.0
    %456 = vmatprep.subr.mxu0 0.0
    %457 = vmatpush1.xpose.msra.mxu0 0.0
    %458 = vmatprep.subr.mxu0 0.0
    %459 = vmatpush1.xpose.msra.mxu0 0.0
    %460 = vmatprep.subr.mxu0 0.0
    %461 = vmatpush1.xpose.msra.mxu0 0.0
    %462 = vmatprep.subr.mxu0 0.0
    %463 = vmatpush1.xpose.msra.mxu0 0.0
    %464 = vmatprep.subr.mxu0 0.0
    %465 = vmatpush1.xpose.msra.mxu0 0.0
    %466 = vmatprep.subr.mxu0 0.0
    %467 = vmatpush1.xpose.msra.mxu0 0.0
    %468 = vmatprep.subr.mxu0 0.0
    %469 = vmatpush1.xpose.msra.mxu0 0.0
    %470 = vmatprep.subr.mxu0 0.0
    %471 = vmatpush1.xpose.msra.mxu0 0.0
    %472 = vmatprep.subr.mxu0 0.0
    %473 = vmatpush1.xpose.msra.mxu0 0.0
    %474 = vmatprep.subr.mxu0 0.0
    %475 = vmatpush1.xpose.msra.mxu0 0.0
    %476 = vmatprep.subr.mxu0 0.0
    %477 = vmatpush1.xpose.msra.mxu0 0.0
    %478 = vmatprep.subr.mxu0 0.0
    %479 = vmatpush1.xpose.msra.mxu0 0.0
    %480 = vmatprep.subr.mxu0 0.0
    %481 = vmatpush1.xpose.msra.mxu0 0.0
    %482 = vmatprep.subr.mxu0 0.0
    %483 = vmatpush1.xpose.msra.mxu0 0.0
    %484 = vmatprep.subr.mxu0 0.0
    %485 = vmatpush1.xpose.msra.mxu0 0.0
    %486 = vmatprep.subr.mxu0 0.0
    %487 = vmatpush1.xpose.msra.mxu0 0.0
    %488 = vmatprep.mubr.f32.mxu0 0.0
    %489 = vmatmul.mubr.f32.gmra.mrb[0].mxu0 %v416
    %v490 = vpop.f32.mrb[0].mxu0
    %v491 = vadd.f32 0.0, %v490
    %v492 = vpop.f32.mrb[0].mxu0
    %493 = vmatprep.mubr.f32.mxu0 0.0
    %494 = vmatmul.mubr.f32.gmra.mrb[0].mxu0 %v418
    %v495 = vpop.f32.mrb[0].mxu0
    %v496 = vadd.f32 0.0, %v495
    %v497 = vpop.f32.mrb[0].mxu0
    %498 = vdwg.mxu0
    %v499 = vsel %vm202, -1e+30, %v491
    %v500 = vsel %vm203, -1e+30, %v496
    %v501 = vsel %vm298, %v499, -inf
    %502 = vmax.xlane.f32.xlu0 %v501
    %v503 = vpop.xlane.xlu0 %502
    %v504 = vsel %vm298, %v500, -inf
    %505 = vmax.xlane.f32.xlu0 %v504
    %v506 = vpop.xlane.xlu0 %505
    %v507 = vsub.f32 %v499, %v503
    %v508 = vsub.f32 %v500, %v506
    %v509 = vmul.f32 %v507, 1.442695
    %v510 = vpow.pop %v509
    %v511 = vmul.f32 %v508, 1.442695
    %v512 = vpow.pop %v511
    %v513 = vsel %vm298, %v510, 0.0
    %514 = vadd.xlane.f32.xlu0 %v513
    %v515 = vpop.xlane.xlu0 %514
    %v516 = vsel %vm298, %v512, 0.0
    %517 = vadd.xlane.f32.xlu0 %v516
    %v518 = vpop.xlane.xlu0 %517
    %v519 = vrcp.pop %v515
    %v520 = vmul.f32 %v510, %v519
    %v521 = vrcp.pop %v518
    %v522 = vmul.f32 %v512, %v521
    %523 = vrot.lane.b32.xlu0 %v159, 56
    %v524 = vpop.permute.xlu0 %523
    %525 = vrot.lane.b32.xlu0 %v164, 56
    %v526 = vpop.permute.xlu0 %525
    %v530 = vsel %vm298, %v520, 0
    %v533 = vsel %vm298, %v522, 0
    %535 = vmatprep.subr.mxu0 0.0
    %536 = vmatpush1.msra.mxu0 %v524
    %537 = vmatprep.subr.mxu0 0.0
    %538 = vmatpush1.msra.mxu0 %v526
    %539 = vmatprep.subr.mxu0 0.0
    %540 = vmatpush1.msra.mxu0 0.0
    %541 = vmatprep.subr.mxu0 0.0
    %542 = vmatpush1.msra.mxu0 0.0
    %543 = vmatprep.subr.mxu0 0.0
    %544 = vmatpush1.msra.mxu0 0.0
    %545 = vmatprep.subr.mxu0 0.0
    %546 = vmatpush1.msra.mxu0 0.0
    %547 = vmatprep.subr.mxu0 0.0
    %548 = vmatpush1.msra.mxu0 0.0
    %549 = vmatprep.subr.mxu0 0.0
    %550 = vmatpush1.msra.mxu0 0.0
    %551 = vmatprep.subr.mxu0 0.0
    %552 = vmatpush1.msra.mxu0 0.0
    %553 = vmatprep.subr.mxu0 0.0
    %554 = vmatpush1.msra.mxu0 0.0
    %555 = vmatprep.subr.mxu0 0.0
    %556 = vmatpush1.msra.mxu0 0.0
    %557 = vmatprep.subr.mxu0 0.0
    %558 = vmatpush1.msra.mxu0 0.0
    %559 = vmatprep.subr.mxu0 0.0
    %560 = vmatpush1.msra.mxu0 0.0
    %561 = vmatprep.subr.mxu0 0.0
    %562 = vmatpush1.msra.mxu0 0.0
    %563 = vmatprep.subr.mxu0 0.0
    %564 = vmatpush1.msra.mxu0 0.0
    %565 = vmatprep.subr.mxu0 0.0
    %566 = vmatpush1.msra.mxu0 0.0
    %567 = vmatprep.subr.mxu0 0.0
    %568 = vmatpush1.msra.mxu0 0.0
    %569 = vmatprep.subr.mxu0 0.0
    %570 = vmatpush1.msra.mxu0 0.0
    %571 = vmatprep.subr.mxu0 0.0
    %572 = vmatpush1.msra.mxu0 0.0
    %573 = vmatprep.subr.mxu0 0.0
    %574 = vmatpush1.msra.mxu0 0.0
    %575 = vmatprep.subr.mxu0 0.0
    %576 = vmatpush1.msra.mxu0 0.0
    %577 = vmatprep.subr.mxu0 0.0
    %578 = vmatpush1.msra.mxu0 0.0
    %579 = vmatprep.subr.mxu0 0.0
    %580 = vmatpush1.msra.mxu0 0.0
    %581 = vmatprep.subr.mxu0 0.0
    %582 = vmatpush1.msra.mxu0 0.0
    %583 = vmatprep.subr.mxu0 0.0
    %584 = vmatpush1.msra.mxu0 0.0
    %585 = vmatprep.subr.mxu0 0.0
    %586 = vmatpush1.msra.mxu0 0.0
    %587 = vmatprep.subr.mxu0 0.0
    %588 = vmatpush1.msra.mxu0 0.0
    %589 = vmatprep.subr.mxu0 0.0
    %590 = vmatpush1.msra.mxu0 0.0
    %591 = vmatprep.subr.mxu0 0.0
    %592 = vmatpush1.msra.mxu0 0.0
    %593 = vmatprep.subr.mxu0 0.0
    %594 = vmatpush1.msra.mxu0 0.0
    %595 = vmatprep.subr.mxu0 0.0
    %596 = vmatpush1.msra.mxu0 0.0
    %597 = vmatprep.subr.mxu0 0.0
    %598 = vmatpush1.msra.mxu0 0.0
    %599 = vmatprep.mubr.f32.mxu0 0.0
    %600 = vmatmul.mubr.f32.gmra.mrb[0].mxu0 %v530
    %v601 = vpop.f32.mrb[0].mxu0
    %v602 = vadd.f32 0.0, %v601
    %v603 = vpop.f32.mrb[0].mxu0
    %604 = vmatprep.mubr.f32.mxu0 0.0
    %605 = vmatmul.mubr.f32.gmra.mrb[0].mxu0 %v533
    %v606 = vpop.f32.mrb[0].mxu0
    %v607 = vadd.f32 0.0, %v606
    %v608 = vpop.f32.mrb[0].mxu0
    %609 = vdwg.mxu0
    %611 = vrot.lane.b32.xlu0 %v25, 32
    %v612 = vpop.permute.xlu0 %611
    %v615 = vsel %vm210, %v602, 0
    %v618 = vsel %vm210, %v607, 0
    %620 = vmatprep.subr.mxu0 0.0
    %621 = vmatpush1.msra.mxu0 %v612
    %622 = vmatprep.subr.mxu0 0.0
    %623 = vmatpush1.msra.mxu0 0.0
    %624 = vmatprep.subr.mxu0 0.0
    %625 = vmatpush1.msra.mxu0 0.0
    %626 = vmatprep.subr.mxu0 0.0
    %627 = vmatpush1.msra.mxu0 0.0
    %628 = vmatprep.subr.mxu0 0.0
    %629 = vmatpush1.msra.mxu0 0.0
    %630 = vmatprep.subr.mxu0 0.0
    %631 = vmatpush1.msra.mxu0 0.0
    %632 = vmatprep.subr.mxu0 0.0
    %633 = vmatpush1.msra.mxu0 0.0
    %634 = vmatprep.subr.mxu0 0.0
    %635 = vmatpush1.msra.mxu0 0.0
    %636 = vmatprep.subr.mxu0 0.0
    %637 = vmatpush1.msra.mxu0 0.0
    %638 = vmatprep.subr.mxu0 0.0
    %639 = vmatpush1.msra.mxu0 0.0
    %640 = vmatprep.subr.mxu0 0.0
    %641 = vmatpush1.msra.mxu0 0.0
    %642 = vmatprep.subr.mxu0 0.0
    %643 = vmatpush1.msra.mxu0 0.0
    %644 = vmatprep.subr.mxu0 0.0
    %645 = vmatpush1.msra.mxu0 0.0
    %646 = vmatprep.subr.mxu0 0.0
    %647 = vmatpush1.msra.mxu0 0.0
    %648 = vmatprep.subr.mxu0 0.0
    %649 = vmatpush1.msra.mxu0 0.0
    %650 = vmatprep.subr.mxu0 0.0
    %651 = vmatpush1.msra.mxu0 0.0
    %652 = vmatprep.subr.mxu0 0.0
    %653 = vmatpush1.msra.mxu0 0.0
    %654 = vmatprep.subr.mxu0 0.0
    %655 = vmatpush1.msra.mxu0 0.0
    %656 = vmatprep.subr.mxu0 0.0
    %657 = vmatpush1.msra.mxu0 0.0
    %658 = vmatprep.subr.mxu0 0.0
    %659 = vmatpush1.msra.mxu0 0.0
    %660 = vmatprep.subr.mxu0 0.0
    %661 = vmatpush1.msra.mxu0 0.0
    %662 = vmatprep.subr.mxu0 0.0
    %663 = vmatpush1.msra.mxu0 0.0
    %664 = vmatprep.subr.mxu0 0.0
    %665 = vmatpush1.msra.mxu0 0.0
    %666 = vmatprep.subr.mxu0 0.0
    %667 = vmatpush1.msra.mxu0 0.0
    %668 = vmatprep.subr.mxu0 0.0
    %669 = vmatpush1.msra.mxu0 0.0
    %670 = vmatprep.subr.mxu0 0.0
    %671 = vmatpush1.msra.mxu0 0.0
    %672 = vmatprep.subr.mxu0 0.0
    %673 = vmatpush1.msra.mxu0 0.0
    %674 = vmatprep.subr.mxu0 0.0
    %675 = vmatpush1.msra.mxu0 0.0
    %676 = vmatprep.subr.mxu0 0.0
    %677 = vmatpush1.msra.mxu0 0.0
    %678 = vmatprep.subr.mxu0 0.0
    %679 = vmatpush1.msra.mxu0 0.0
    %680 = vmatprep.subr.mxu0 0.0
    %681 = vmatpush1.msra.mxu0 0.0
    %682 = vmatprep.subr.mxu0 0.0
    %683 = vmatpush1.msra.mxu0 0.0
    %684 = vmatprep.mubr.f32.mxu0 0.0
    %685 = vmatmul.mubr.f32.gmra.mrb[0].mxu0 %v615
    %v686 = vpop.f32.mrb[0].mxu0
    %v687 = vadd.f32 0.0, %v686
    %v688 = vpop.f32.mrb[0].mxu0
    %689 = vmatprep.mubr.f32.mxu0 0.0
    %690 = vmatmul.mubr.f32.gmra.mrb[0].mxu0 %v618
    %v691 = vpop.f32.mrb[0].mxu0
    %v692 = vadd.f32 0.0, %v691
    %v693 = vpop.f32.mrb[0].mxu0
    %694 = vdwg.mxu0
    %696 = vrot.lane.b32.xlu0 %v24, 32
    %v697 = vpop.permute.xlu0 %696
    %v700 = vsel %vm210, %v400, 0
    %v703 = vsel %vm210, %v405, 0
    %705 = vmatprep.subr.mxu0 0.0
    %706 = vmatpush1.msra.mxu0 %v697
    %707 = vmatprep.subr.mxu0 0.0
    %708 = vmatpush1.msra.mxu0 0.0
    %709 = vmatprep.subr.mxu0 0.0
    %710 = vmatpush1.msra.mxu0 0.0
    %711 = vmatprep.subr.mxu0 0.0
    %712 = vmatpush1.msra.mxu0 0.0
    %713 = vmatprep.subr.mxu0 0.0
    %714 = vmatpush1.msra.mxu0 0.0
    %715 = vmatprep.subr.mxu0 0.0
    %716 = vmatpush1.msra.mxu0 0.0
    %717 = vmatprep.subr.mxu0 0.0
    %718 = vmatpush1.msra.mxu0 0.0
    %719 = vmatprep.subr.mxu0 0.0
    %720 = vmatpush1.msra.mxu0 0.0
    %721 = vmatprep.subr.mxu0 0.0
    %722 = vmatpush1.msra.mxu0 0.0
    %723 = vmatprep.subr.mxu0 0.0
    %724 = vmatpush1.msra.mxu0 0.0
    %725 = vmatprep.subr.mxu0 0.0
    %726 = vmatpush1.msra.mxu0 0.0
    %727 = vmatprep.subr.mxu0 0.0
    %728 = vmatpush1.msra.mxu0 0.0
    %729 = vmatprep.subr.mxu0 0.0
    %730 = vmatpush1.msra.mxu0 0.0
    %731 = vmatprep.subr.mxu0 0.0
    %732 = vmatpush1.msra.mxu0 0.0
    %733 = vmatprep.subr.mxu0 0.0
    %734 = vmatpush1.msra.mxu0 0.0
    %735 = vmatprep.subr.mxu0 0.0
    %736 = vmatpush1.msra.mxu0 0.0
    %737 = vmatprep.subr.mxu0 0.0
    %738 = vmatpush1.msra.mxu0 0.0
    %739 = vmatprep.subr.mxu0 0.0
    %740 = vmatpush1.msra.mxu0 0.0
    %741 = vmatprep.subr.mxu0 0.0
    %742 = vmatpush1.msra.mxu0 0.0
    %743 = vmatprep.subr.mxu0 0.0
    %744 = vmatpush1.msra.mxu0 0.0
    %745 = vmatprep.subr.mxu0 0.0
    %746 = vmatpush1.msra.mxu0 0.0
    %747 = vmatprep.subr.mxu0 0.0
    %748 = vmatpush1.msra.mxu0 0.0
    %749 = vmatprep.subr.mxu0 0.0
    %750 = vmatpush1.msra.mxu0 0.0
    %751 = vmatprep.subr.mxu0 0.0
    %752 = vmatpush1.msra.mxu0 0.0
    %753 = vmatprep.subr.mxu0 0.0
    %754 = vmatpush1.msra.mxu0 0.0
    %755 = vmatprep.subr.mxu0 0.0
    %756 = vmatpush1.msra.mxu0 0.0
    %757 = vmatprep.subr.mxu0 0.0
    %758 = vmatpush1.msra.mxu0 0.0
    %759 = vmatprep.subr.mxu0 0.0
    %760 = vmatpush1.msra.mxu0 0.0
    %761 = vmatprep.subr.mxu0 0.0
    %762 = vmatpush1.msra.mxu0 0.0
    %763 = vmatprep.subr.mxu0 0.0
    %764 = vmatpush1.msra.mxu0 0.0
    %765 = vmatprep.subr.mxu0 0.0
    %766 = vmatpush1.msra.mxu0 0.0
    %767 = vmatprep.subr.mxu0 0.0
    %768 = vmatpush1.msra.mxu0 0.0
    %769 = vmatprep.mubr.f32.mxu0 0.0
    %770 = vmatmul.mubr.f32.gmra.mrb[0].mxu0 %v700
    %v771 = vpop.f32.mrb[0].mxu0
    %v772 = vadd.f32 %v687, %v771
    %v773 = vpop.f32.mrb[0].mxu0
    %774 = vmatprep.mubr.f32.mxu0 0.0
    %775 = vmatmul.mubr.f32.gmra.mrb[0].mxu0 %v703
    %v776 = vpop.f32.mrb[0].mxu0
    %v777 = vadd.f32 %v692, %v776
    %v778 = vpop.f32.mrb[0].mxu0
    %779 = vdwg.mxu0
    %780 = vrot.lane.b32.xlu0 %v167, 112
    %v781 = vpop.permute.xlu0 %780
    %782 = vrot.lane.b32.xlu0 %v168, 112
    %v783 = vpop.permute.xlu0 %782
    %784 = vrot.lane.b32.xlu0 %v159, 80
    %v785 = vpop.permute.xlu0 %784
    %786 = vrot.lane.b32.xlu0 %v164, 80
    %v787 = vpop.permute.xlu0 %786
    %v788 = vsel %vm210, %v781, 0
    %v790 = vsel %vm210, %v783, 0
    %v792 = vsel %vm210, %v785, 0
    %v794 = vsel %vm210, %v787, 0
    %796 = vmatprep.subr.mxu0 0.0
    %797 = vmatpush1.xpose.msra.mxu0 %v792
    %798 = vmatprep.subr.mxu0 0.0
    %799 = vmatpush1.xpose.msra.mxu0 %v794
    %800 = vmatprep.subr.mxu0 0.0
    %801 = vmatpush1.xpose.msra.mxu0 0.0
    %802 = vmatprep.subr.mxu0 0.0
    %803 = vmatpush1.xpose.msra.mxu0 0.0
    %804 = vmatprep.subr.mxu0 0.0
    %805 = vmatpush1.xpose.msra.mxu0 0.0
    %806 = vmatprep.subr.mxu0 0.0
    %807 = vmatpush1.xpose.msra.mxu0 0.0
    %808 = vmatprep.subr.mxu0 0.0
    %809 = vmatpush1.xpose.msra.mxu0 0.0
    %810 = vmatprep.subr.mxu0 0.0
    %811 = vmatpush1.xpose.msra.mxu0 0.0
    %812 = vmatprep.subr.mxu0 0.0
    %813 = vmatpush1.xpose.msra.mxu0 0.0
    %814 = vmatprep.subr.mxu0 0.0
    %815 = vmatpush1.xpose.msra.mxu0 0.0
    %816 = vmatprep.subr.mxu0 0.0
    %817 = vmatpush1.xpose.msra.mxu0 0.0
    %818 = vmatprep.subr.mxu0 0.0
    %819 = vmatpush1.xpose.msra.mxu0 0.0
    %820 = vmatprep.subr.mxu0 0.0
    %821 = vmatpush1.xpose.msra.mxu0 0.0
    %822 = vmatprep.subr.mxu0 0.0
    %823 = vmatpush1.xpose.msra.mxu0 0.0
    %824 = vmatprep.subr.mxu0 0.0
    %825 = vmatpush1.xpose.msra.mxu0 0.0
    %826 = vmatprep.subr.mxu0 0.0
    %827 = vmatpush1.xpose.msra.mxu0 0.0
    %828 = vmatprep.subr.mxu0 0.0
    %829 = vmatpush1.xpose.msra.mxu0 0.0
    %830 = vmatprep.subr.mxu0 0.0
    %831 = vmatpush1.xpose.msra.mxu0 0.0
    %832 = vmatprep.subr.mxu0 0.0
    %833 = vmatpush1.xpose.msra.mxu0 0.0
    %834 = vmatprep.subr.mxu0 0.0
    %835 = vmatpush1.xpose.msra.mxu0 0.0
    %836 = vmatprep.subr.mxu0 0.0
    %837 = vmatpush1.xpose.msra.mxu0 0.0
    %838 = vmatprep.subr.mxu0 0.0
    %839 = vmatpush1.xpose.msra.mxu0 0.0
    %840 = vmatprep.subr.mxu0 0.0
    %841 = vmatpush1.xpose.msra.mxu0 0.0
    %842 = vmatprep.subr.mxu0 0.0
    %843 = vmatpush1.xpose.msra.mxu0 0.0
    %844 = vmatprep.subr.mxu0 0.0
    %845 = vmatpush1.xpose.msra.mxu0 0.0
    %846 = vmatprep.subr.mxu0 0.0
    %847 = vmatpush1.xpose.msra.mxu0 0.0
    %848 = vmatprep.subr.mxu0 0.0
    %849 = vmatpush1.xpose.msra.mxu0 0.0
    %850 = vmatprep.subr.mxu0 0.0
    %851 = vmatpush1.xpose.msra.mxu0 0.0
    %852 = vmatprep.subr.mxu0 0.0
    %853 = vmatpush1.xpose.msra.mxu0 0.0
    %854 = vmatprep.subr.mxu0 0.0
    %855 = vmatpush1.xpose.msra.mxu0 0.0
    %856 = vmatprep.subr.mxu0 0.0
    %857 = vmatpush1.xpose.msra.mxu0 0.0
    %858 = vmatprep.subr.mxu0 0.0
    %859 = vmatpush1.xpose.msra.mxu0 0.0
    %860 = vmatprep.mubr.f32.mxu0 0.0
    %861 = vmatmul.mubr.f32.gmra.mrb[0].mxu0 %v788
    %v862 = vpop.f32.mrb[0].mxu0
    %v863 = vadd.f32 0.0, %v862
    %v864 = vpop.f32.mrb[0].mxu0
    %865 = vmatprep.mubr.f32.mxu0 0.0
    %866 = vmatmul.mubr.f32.gmra.mrb[0].mxu0 %v790
    %v867 = vpop.f32.mrb[0].mxu0
    %v868 = vadd.f32 0.0, %v867
    %v869 = vpop.f32.mrb[0].mxu0
    %870 = vdwg.mxu0
    %v871 = vsel %vm202, -1e+30, %v863
    %v872 = vsel %vm203, -1e+30, %v868
    %v873 = vsel %vm298, %v871, -inf
    %874 = vmax.xlane.f32.xlu0 %v873
    %v875 = vpop.xlane.xlu0 %874
    %v876 = vsel %vm298, %v872, -inf
    %877 = vmax.xlane.f32.xlu0 %v876
    %v878 = vpop.xlane.xlu0 %877
    %v879 = vsub.f32 %v871, %v875
    %v880 = vsub.f32 %v872, %v878
    %v881 = vmul.f32 %v879, 1.442695
    %v882 = vpow.pop %v881
    %v883 = vmul.f32 %v880, 1.442695
    %v884 = vpow.pop %v883
    %v885 = vsel %vm298, %v882, 0.0
    %886 = vadd.xlane.f32.xlu0 %v885
    %v887 = vpop.xlane.xlu0 %886
    %v888 = vsel %vm298, %v884, 0.0
    %889 = vadd.xlane.f32.xlu0 %v888
    %v890 = vpop.xlane.xlu0 %889
    %v891 = vrcp.pop %v887
    %v892 = vmul.f32 %v882, %v891
    %v893 = vrcp.pop %v890
    %v894 = vmul.f32 %v884, %v893
    %895 = vrot.lane.b32.xlu0 %v159, 48
    %v896 = vpop.permute.xlu0 %895
    %897 = vrot.lane.b32.xlu0 %v164, 48
    %v898 = vpop.permute.xlu0 %897
    %v902 = vsel %vm298, %v892, 0
    %v905 = vsel %vm298, %v894, 0
    %907 = vmatprep.subr.mxu0 0.0
    %908 = vmatpush1.msra.mxu0 %v896
    %909 = vmatprep.subr.mxu0 0.0
    %910 = vmatpush1.msra.mxu0 %v898
    %911 = vmatprep.subr.mxu0 0.0
    %912 = vmatpush1.msra.mxu0 0.0
    %913 = vmatprep.subr.mxu0 0.0
    %914 = vmatpush1.msra.mxu0 0.0
    %915 = vmatprep.subr.mxu0 0.0
    %916 = vmatpush1.msra.mxu0 0.0
    %917 = vmatprep.subr.mxu0 0.0
    %918 = vmatpush1.msra.mxu0 0.0
    %919 = vmatprep.subr.mxu0 0.0
    %920 = vmatpush1.msra.mxu0 0.0
    %921 = vmatprep.subr.mxu0 0.0
    %922 = vmatpush1.msra.mxu0 0.0
    %923 = vmatprep.subr.mxu0 0.0
    %924 = vmatpush1.msra.mxu0 0.0
    %925 = vmatprep.subr.mxu0 0.0
    %926 = vmatpush1.msra.mxu0 0.0
    %927 = vmatprep.subr.mxu0 0.0
    %928 = vmatpush1.msra.mxu0 0.0
    %929 = vmatprep.subr.mxu0 0.0
    %930 = vmatpush1.msra.mxu0 0.0
    %931 = vmatprep.subr.mxu0 0.0
    %932 = vmatpush1.msra.mxu0 0.0
    %933 = vmatprep.subr.mxu0 0.0
    %934 = vmatpush1.msra.mxu0 0.0
    %935 = vmatprep.subr.mxu0 0.0
    %936 = vmatpush1.msra.mxu0 0.0
    %937 = vmatprep.subr.mxu0 0.0
    %938 = vmatpush1.msra.mxu0 0.0
    %939 = vmatprep.subr.mxu0 0.0
    %940 = vmatpush1.msra.mxu0 0.0
    %941 = vmatprep.subr.mxu0 0.0
    %942 = vmatpush1.msra.mxu0 0.0
    %943 = vmatprep.subr.mxu0 0.0
    %944 = vmatpush1.msra.mxu0 0.0
    %945 = vmatprep.subr.mxu0 0.0
    %946 = vmatpush1.msra.mxu0 0.0
    %947 = vmatprep.subr.mxu0 0.0
    %948 = vmatpush1.msra.mxu0 0.0
    %949 = vmatprep.subr.mxu0 0.0
    %950 = vmatpush1.msra.mxu0 0.0
    %951 = vmatprep.subr.mxu0 0.0
    %952 = vmatpush1.msra.mxu0 0.0
    %953 = vmatprep.subr.mxu0 0.0
    %954 = vmatpush1.msra.mxu0 0.0
    %955 = vmatprep.subr.mxu0 0.0
    %956 = vmatpush1.msra.mxu0 0.0
    %957 = vmatprep.subr.mxu0 0.0
    %958 = vmatpush1.msra.mxu0 0.0
    %959 = vmatprep.subr.mxu0 0.0
    %960 = vmatpush1.msra.mxu0 0.0
    %961 = vmatprep.subr.mxu0 0.0
    %962 = vmatpush1.msra.mxu0 0.0
    %963 = vmatprep.subr.mxu0 0.0
    %964 = vmatpush1.msra.mxu0 0.0
    %965 = vmatprep.subr.mxu0 0.0
    %966 = vmatpush1.msra.mxu0 0.0
    %967 = vmatprep.subr.mxu0 0.0
    %968 = vmatpush1.msra.mxu0 0.0
    %969 = vmatprep.subr.mxu0 0.0
    %970 = vmatpush1.msra.mxu0 0.0
    %971 = vmatprep.mubr.f32.mxu0 0.0
    %972 = vmatmul.mubr.f32.gmra.mrb[0].mxu0 %v902
    %v973 = vpop.f32.mrb[0].mxu0
    %v974 = vadd.f32 0.0, %v973
    %v975 = vpop.f32.mrb[0].mxu0
    %976 = vmatprep.mubr.f32.mxu0 0.0
    %977 = vmatmul.mubr.f32.gmra.mrb[0].mxu0 %v905
    %v978 = vpop.f32.mrb[0].mxu0
    %v979 = vadd.f32 0.0, %v978
    %v980 = vpop.f32.mrb[0].mxu0
    %981 = vdwg.mxu0
    %983 = vrot.lane.b32.xlu0 %v26, 32
    %v984 = vpop.permute.xlu0 %983
    %v987 = vsel %vm210, %v974, 0
    %v990 = vsel %vm210, %v979, 0
    %992 = vmatprep.subr.mxu0 0.0
    %993 = vmatpush1.msra.mxu0 %v984
    %994 = vmatprep.subr.mxu0 0.0
    %995 = vmatpush1.msra.mxu0 0.0
    %996 = vmatprep.subr.mxu0 0.0
    %997 = vmatpush1.msra.mxu0 0.0
    %998 = vmatprep.subr.mxu0 0.0
    %999 = vmatpush1.msra.mxu0 0.0
    %1000 = vmatprep.subr.mxu0 0.0
    %1001 = vmatpush1.msra.mxu0 0.0
    %1002 = vmatprep.subr.mxu0 0.0
    %1003 = vmatpush1.msra.mxu0 0.0
    %1004 = vmatprep.subr.mxu0 0.0
    %1005 = vmatpush1.msra.mxu0 0.0
    %1006 = vmatprep.subr.mxu0 0.0
    %1007 = vmatpush1.msra.mxu0 0.0
    %1008 = vmatprep.subr.mxu0 0.0
    %1009 = vmatpush1.msra.mxu0 0.0
    %1010 = vmatprep.subr.mxu0 0.0
    %1011 = vmatpush1.msra.mxu0 0.0
    %1012 = vmatprep.subr.mxu0 0.0
    %1013 = vmatpush1.msra.mxu0 0.0
    %1014 = vmatprep.subr.mxu0 0.0
    %1015 = vmatpush1.msra.mxu0 0.0
    %1016 = vmatprep.subr.mxu0 0.0
    %1017 = vmatpush1.msra.mxu0 0.0
    %1018 = vmatprep.subr.mxu0 0.0
    %1019 = vmatpush1.msra.mxu0 0.0
    %1020 = vmatprep.subr.mxu0 0.0
    %1021 = vmatpush1.msra.mxu0 0.0
    %1022 = vmatprep.subr.mxu0 0.0
    %1023 = vmatpush1.msra.mxu0 0.0
    %1024 = vmatprep.subr.mxu0 0.0
    %1025 = vmatpush1.msra.mxu0 0.0
    %1026 = vmatprep.subr.mxu0 0.0
    %1027 = vmatpush1.msra.mxu0 0.0
    %1028 = vmatprep.subr.mxu0 0.0
    %1029 = vmatpush1.msra.mxu0 0.0
    %1030 = vmatprep.subr.mxu0 0.0
    %1031 = vmatpush1.msra.mxu0 0.0
    %1032 = vmatprep.subr.mxu0 0.0
    %1033 = vmatpush1.msra.mxu0 0.0
    %1034 = vmatprep.subr.mxu0 0.0
    %1035 = vmatpush1.msra.mxu0 0.0
    %1036 = vmatprep.subr.mxu0 0.0
    %1037 = vmatpush1.msra.mxu0 0.0
    %1038 = vmatprep.subr.mxu0 0.0
    %1039 = vmatpush1.msra.mxu0 0.0
    %1040 = vmatprep.subr.mxu0 0.0
    %1041 = vmatpush1.msra.mxu0 0.0
    %1042 = vmatprep.subr.mxu0 0.0
    %1043 = vmatpush1.msra.mxu0 0.0
    %1044 = vmatprep.subr.mxu0 0.0
    %1045 = vmatpush1.msra.mxu0 0.0
    %1046 = vmatprep.subr.mxu0 0.0
    %1047 = vmatpush1.msra.mxu0 0.0
    %1048 = vmatprep.subr.mxu0 0.0
    %1049 = vmatpush1.msra.mxu0 0.0
    %1050 = vmatprep.subr.mxu0 0.0
    %1051 = vmatpush1.msra.mxu0 0.0
    %1052 = vmatprep.subr.mxu0 0.0
    %1053 = vmatpush1.msra.mxu0 0.0
    %1054 = vmatprep.subr.mxu0 0.0
    %1055 = vmatpush1.msra.mxu0 0.0
    %1056 = vmatprep.mubr.f32.mxu0 0.0
    %1057 = vmatmul.mubr.f32.gmra.mrb[0].mxu0 %v987
    %v1058 = vpop.f32.mrb[0].mxu0
    %v1059 = vadd.f32 0.0, %v1058
    %v1060 = vpop.f32.mrb[0].mxu0
    %1061 = vmatprep.mubr.f32.mxu0 0.0
    %1062 = vmatmul.mubr.f32.gmra.mrb[0].mxu0 %v990
    %v1063 = vpop.f32.mrb[0].mxu0
    %v1064 = vadd.f32 0.0, %v1063
    %v1065 = vpop.f32.mrb[0].mxu0
    %1066 = vdwg.mxu0
    %v1067 = vadd.f32 %v772, %v1059
    %v1068 = vadd.f32 %v777, %v1064
    %1069 = vrot.lane.b32.xlu0 %v167, 104
    %v1070 = vpop.permute.xlu0 %1069
    %1071 = vrot.lane.b32.xlu0 %v168, 104
    %v1072 = vpop.permute.xlu0 %1071
    %1073 = vrot.lane.b32.xlu0 %v159, 72
    %v1074 = vpop.permute.xlu0 %1073
    %1075 = vrot.lane.b32.xlu0 %v164, 72
    %v1076 = vpop.permute.xlu0 %1075
    %v1077 = vsel %vm210, %v1070, 0
    %v1079 = vsel %vm210, %v1072, 0
    %v1081 = vsel %vm210, %v1074, 0
    %v1083 = vsel %vm210, %v1076, 0
    %1085 = vmatprep.subr.mxu0 0.0
    %1086 = vmatpush1.xpose.msra.mxu0 %v1081
    %1087 = vmatprep.subr.mxu0 0.0
    %1088 = vmatpush1.xpose.msra.mxu0 %v1083
    %1089 = vmatprep.subr.mxu0 0.0
    %1090 = vmatpush1.xpose.msra.mxu0 0.0
    %1091 = vmatprep.subr.mxu0 0.0
    %1092 = vmatpush1.xpose.msra.mxu0 0.0
    %1093 = vmatprep.subr.mxu0 0.0
    %1094 = vmatpush1.xpose.msra.mxu0 0.0
    %1095 = vmatprep.subr.mxu0 0.0
    %1096 = vmatpush1.xpose.msra.mxu0 0.0
    %1097 = vmatprep.subr.mxu0 0.0
    %1098 = vmatpush1.xpose.msra.mxu0 0.0
    %1099 = vmatprep.subr.mxu0 0.0
    %1100 = vmatpush1.xpose.msra.mxu0 0.0
    %1101 = vmatprep.subr.mxu0 0.0
    %1102 = vmatpush1.xpose.msra.mxu0 0.0
    %1103 = vmatprep.subr.mxu0 0.0
    %1104 = vmatpush1.xpose.msra.mxu0 0.0
    %1105 = vmatprep.subr.mxu0 0.0
    %1106 = vmatpush1.xpose.msra.mxu0 0.0
    %1107 = vmatprep.subr.mxu0 0.0
    %1108 = vmatpush1.xpose.msra.mxu0 0.0
    %1109 = vmatprep.subr.mxu0 0.0
    %1110 = vmatpush1.xpose.msra.mxu0 0.0
    %1111 = vmatprep.subr.mxu0 0.0
    %1112 = vmatpush1.xpose.msra.mxu0 0.0
    %1113 = vmatprep.subr.mxu0 0.0
    %1114 = vmatpush1.xpose.msra.mxu0 0.0
    %1115 = vmatprep.subr.mxu0 0.0
    %1116 = vmatpush1.xpose.msra.mxu0 0.0
    %1117 = vmatprep.subr.mxu0 0.0
    %1118 = vmatpush1.xpose.msra.mxu0 0.0
    %1119 = vmatprep.subr.mxu0 0.0
    %1120 = vmatpush1.xpose.msra.mxu0 0.0
    %1121 = vmatprep.subr.mxu0 0.0
    %1122 = vmatpush1.xpose.msra.mxu0 0.0
    %1123 = vmatprep.subr.mxu0 0.0
    %1124 = vmatpush1.xpose.msra.mxu0 0.0
    %1125 = vmatprep.subr.mxu0 0.0
    %1126 = vmatpush1.xpose.msra.mxu0 0.0
    %1127 = vmatprep.subr.mxu0 0.0
    %1128 = vmatpush1.xpose.msra.mxu0 0.0
    %1129 = vmatprep.subr.mxu0 0.0
    %1130 = vmatpush1.xpose.msra.mxu0 0.0
    %1131 = vmatprep.subr.mxu0 0.0
    %1132 = vmatpush1.xpose.msra.mxu0 0.0
    %1133 = vmatprep.subr.mxu0 0.0
    %1134 = vmatpush1.xpose.msra.mxu0 0.0
    %1135 = vmatprep.subr.mxu0 0.0
    %1136 = vmatpush1.xpose.msra.mxu0 0.0
    %1137 = vmatprep.subr.mxu0 0.0
    %1138 = vmatpush1.xpose.msra.mxu0 0.0
    %1139 = vmatprep.subr.mxu0 0.0
    %1140 = vmatpush1.xpose.msra.mxu0 0.0
    %1141 = vmatprep.subr.mxu0 0.0
    %1142 = vmatpush1.xpose.msra.mxu0 0.0
    %1143 = vmatprep.subr.mxu0 0.0
    %1144 = vmatpush1.xpose.msra.mxu0 0.0
    %1145 = vmatprep.subr.mxu0 0.0
    %1146 = vmatpush1.xpose.msra.mxu0 0.0
    %1147 = vmatprep.subr.mxu0 0.0
    %1148 = vmatpush1.xpose.msra.mxu0 0.0
    %1149 = vmatprep.mubr.f32.mxu0 0.0
    %1150 = vmatmul.mubr.f32.gmra.mrb[0].mxu0 %v1077
    %v1151 = vpop.f32.mrb[0].mxu0
    %v1152 = vadd.f32 0.0, %v1151
    %v1153 = vpop.f32.mrb[0].mxu0
    %1154 = vmatprep.mubr.f32.mxu0 0.0
    %1155 = vmatmul.mubr.f32.gmra.mrb[0].mxu0 %v1079
    %v1156 = vpop.f32.mrb[0].mxu0
    %v1157 = vadd.f32 0.0, %v1156
    %v1158 = vpop.f32.mrb[0].mxu0
    %1159 = vdwg.mxu0
    %v1160 = vsel %vm202, -1e+30, %v1152
    %v1161 = vsel %vm203, -1e+30, %v1157
    %v1162 = vsel %vm298, %v1160, -inf
    %1163 = vmax.xlane.f32.xlu0 %v1162
    %v1164 = vpop.xlane.xlu0 %1163
    %v1165 = vsel %vm298, %v1161, -inf
    %1166 = vmax.xlane.f32.xlu0 %v1165
    %v1167 = vpop.xlane.xlu0 %1166
    %v1168 = vsub.f32 %v1160, %v1164
    %v1169 = vsub.f32 %v1161, %v1167
    %v1170 = vmul.f32 %v1168, 1.442695
    %v1171 = vpow.pop %v1170
    %v1172 = vmul.f32 %v1169, 1.442695
    %v1173 = vpow.pop %v1172
    %v1174 = vsel %vm298, %v1171, 0.0
    %1175 = vadd.xlane.f32.xlu0 %v1174
    %v1176 = vpop.xlane.xlu0 %1175
    %v1177 = vsel %vm298, %v1173, 0.0
    %1178 = vadd.xlane.f32.xlu0 %v1177
    %v1179 = vpop.xlane.xlu0 %1178
    %v1180 = vrcp.pop %v1176
    %v1181 = vmul.f32 %v1171, %v1180
    %v1182 = vrcp.pop %v1179
    %v1183 = vmul.f32 %v1173, %v1182
    %1184 = vrot.lane.b32.xlu0 %v159, 40
    %v1185 = vpop.permute.xlu0 %1184
    %1186 = vrot.lane.b32.xlu0 %v164, 40
    %v1187 = vpop.permute.xlu0 %1186
    %v1191 = vsel %vm298, %v1181, 0
    %v1194 = vsel %vm298, %v1183, 0
    %1196 = vmatprep.subr.mxu0 0.0
    %1197 = vmatpush1.msra.mxu0 %v1185
    %1198 = vmatprep.subr.mxu0 0.0
    %1199 = vmatpush1.msra.mxu0 %v1187
    %1200 = vmatprep.subr.mxu0 0.0
    %1201 = vmatpush1.msra.mxu0 0.0
    %1202 = vmatprep.subr.mxu0 0.0
    %1203 = vmatpush1.msra.mxu0 0.0
    %1204 = vmatprep.subr.mxu0 0.0
    %1205 = vmatpush1.msra.mxu0 0.0
    %1206 = vmatprep.subr.mxu0 0.0
    %1207 = vmatpush1.msra.mxu0 0.0
    %1208 = vmatprep.subr.mxu0 0.0
    %1209 = vmatpush1.msra.mxu0 0.0
    %1210 = vmatprep.subr.mxu0 0.0
    %1211 = vmatpush1.msra.mxu0 0.0
    %1212 = vmatprep.subr.mxu0 0.0
    %1213 = vmatpush1.msra.mxu0 0.0
    %1214 = vmatprep.subr.mxu0 0.0
    %1215 = vmatpush1.msra.mxu0 0.0
    %1216 = vmatprep.subr.mxu0 0.0
    %1217 = vmatpush1.msra.mxu0 0.0
    %1218 = vmatprep.subr.mxu0 0.0
    %1219 = vmatpush1.msra.mxu0 0.0
    %1220 = vmatprep.subr.mxu0 0.0
    %1221 = vmatpush1.msra.mxu0 0.0
    %1222 = vmatprep.subr.mxu0 0.0
    %1223 = vmatpush1.msra.mxu0 0.0
    %1224 = vmatprep.subr.mxu0 0.0
    %1225 = vmatpush1.msra.mxu0 0.0
    %1226 = vmatprep.subr.mxu0 0.0
    %1227 = vmatpush1.msra.mxu0 0.0
    %1228 = vmatprep.subr.mxu0 0.0
    %1229 = vmatpush1.msra.mxu0 0.0
    %1230 = vmatprep.subr.mxu0 0.0
    %1231 = vmatpush1.msra.mxu0 0.0
    %1232 = vmatprep.subr.mxu0 0.0
    %1233 = vmatpush1.msra.mxu0 0.0
    %1234 = vmatprep.subr.mxu0 0.0
    %1235 = vmatpush1.msra.mxu0 0.0
    %1236 = vmatprep.subr.mxu0 0.0
    %1237 = vmatpush1.msra.mxu0 0.0
    %1238 = vmatprep.subr.mxu0 0.0
    %1239 = vmatpush1.msra.mxu0 0.0
    %1240 = vmatprep.subr.mxu0 0.0
    %1241 = vmatpush1.msra.mxu0 0.0
    %1242 = vmatprep.subr.mxu0 0.0
    %1243 = vmatpush1.msra.mxu0 0.0
    %1244 = vmatprep.subr.mxu0 0.0
    %1245 = vmatpush1.msra.mxu0 0.0
    %1246 = vmatprep.subr.mxu0 0.0
    %1247 = vmatpush1.msra.mxu0 0.0
    %1248 = vmatprep.subr.mxu0 0.0
    %1249 = vmatpush1.msra.mxu0 0.0
    %1250 = vmatprep.subr.mxu0 0.0
    %1251 = vmatpush1.msra.mxu0 0.0
    %1252 = vmatprep.subr.mxu0 0.0
    %1253 = vmatpush1.msra.mxu0 0.0
    %1254 = vmatprep.subr.mxu0 0.0
    %1255 = vmatpush1.msra.mxu0 0.0
    %1256 = vmatprep.subr.mxu0 0.0
    %1257 = vmatpush1.msra.mxu0 0.0
    %1258 = vmatprep.subr.mxu0 0.0
    %1259 = vmatpush1.msra.mxu0 0.0
    %1260 = vmatprep.mubr.f32.mxu0 0.0
    %1261 = vmatmul.mubr.f32.gmra.mrb[0].mxu0 %v1191
    %v1262 = vpop.f32.mrb[0].mxu0
    %v1263 = vadd.f32 0.0, %v1262
    %v1264 = vpop.f32.mrb[0].mxu0
    %1265 = vmatprep.mubr.f32.mxu0 0.0
    %1266 = vmatmul.mubr.f32.gmra.mrb[0].mxu0 %v1194
    %v1267 = vpop.f32.mrb[0].mxu0
    %v1268 = vadd.f32 0.0, %v1267
    %v1269 = vpop.f32.mrb[0].mxu0
    %1270 = vdwg.mxu0
    %1272 = vrot.lane.b32.xlu0 %v27, 32
    %v1273 = vpop.permute.xlu0 %1272
    %v1276 = vsel %vm210, %v1263, 0
    %v1279 = vsel %vm210, %v1268, 0
    %1281 = vmatprep.subr.mxu0 0.0
    %1282 = vmatpush1.msra.mxu0 %v1273
    %1283 = vmatprep.subr.mxu0 0.0
    %1284 = vmatpush1.msra.mxu0 0.0
    %1285 = vmatprep.subr.mxu0 0.0
    %1286 = vmatpush1.msra.mxu0 0.0
    %1287 = vmatprep.subr.mxu0 0.0
    %1288 = vmatpush1.msra.mxu0 0.0
    %1289 = vmatprep.subr.mxu0 0.0
    %1290 = vmatpush1.msra.mxu0 0.0
    %1291 = vmatprep.subr.mxu0 0.0
    %1292 = vmatpush1.msra.mxu0 0.0
    %1293 = vmatprep.subr.mxu0 0.0
    %1294 = vmatpush1.msra.mxu0 0.0
    %1295 = vmatprep.subr.mxu0 0.0
    %1296 = vmatpush1.msra.mxu0 0.0
    %1297 = vmatprep.subr.mxu0 0.0
    %1298 = vmatpush1.msra.mxu0 0.0
    %1299 = vmatprep.subr.mxu0 0.0
    %1300 = vmatpush1.msra.mxu0 0.0
    %1301 = vmatprep.subr.mxu0 0.0
    %1302 = vmatpush1.msra.mxu0 0.0
    %1303 = vmatprep.subr.mxu0 0.0
    %1304 = vmatpush1.msra.mxu0 0.0
    %1305 = vmatprep.subr.mxu0 0.0
    %1306 = vmatpush1.msra.mxu0 0.0
    %1307 = vmatprep.subr.mxu0 0.0
    %1308 = vmatpush1.msra.mxu0 0.0
    %1309 = vmatprep.subr.mxu0 0.0
    %1310 = vmatpush1.msra.mxu0 0.0
    %1311 = vmatprep.subr.mxu0 0.0
    %1312 = vmatpush1.msra.mxu0 0.0
    %1313 = vmatprep.subr.mxu0 0.0
    %1314 = vmatpush1.msra.mxu0 0.0
    %1315 = vmatprep.subr.mxu0 0.0
    %1316 = vmatpush1.msra.mxu0 0.0
    %1317 = vmatprep.subr.mxu0 0.0
    %1318 = vmatpush1.msra.mxu0 0.0
    %1319 = vmatprep.subr.mxu0 0.0
    %1320 = vmatpush1.msra.mxu0 0.0
    %1321 = vmatprep.subr.mxu0 0.0
    %1322 = vmatpush1.msra.mxu0 0.0
    %1323 = vmatprep.subr.mxu0 0.0
    %1324 = vmatpush1.msra.mxu0 0.0
    %1325 = vmatprep.subr.mxu0 0.0
    %1326 = vmatpush1.msra.mxu0 0.0
    %1327 = vmatprep.subr.mxu0 0.0
    %1328 = vmatpush1.msra.mxu0 0.0
    %1329 = vmatprep.subr.mxu0 0.0
    %1330 = vmatpush1.msra.mxu0 0.0
    %1331 = vmatprep.subr.mxu0 0.0
    %1332 = vmatpush1.msra.mxu0 0.0
    %1333 = vmatprep.subr.mxu0 0.0
    %1334 = vmatpush1.msra.mxu0 0.0
    %1335 = vmatprep.subr.mxu0 0.0
    %1336 = vmatpush1.msra.mxu0 0.0
    %1337 = vmatprep.subr.mxu0 0.0
    %1338 = vmatpush1.msra.mxu0 0.0
    %1339 = vmatprep.subr.mxu0 0.0
    %1340 = vmatpush1.msra.mxu0 0.0
    %1341 = vmatprep.subr.mxu0 0.0
    %1342 = vmatpush1.msra.mxu0 0.0
    %1343 = vmatprep.subr.mxu0 0.0
    %1344 = vmatpush1.msra.mxu0 0.0
    %1345 = vmatprep.mubr.f32.mxu0 0.0
    %1346 = vmatmul.mubr.f32.gmra.mrb[0].mxu0 %v1276
    %v1347 = vpop.f32.mrb[0].mxu0
    %v1348 = vadd.f32 0.0, %v1347
    %v1349 = vpop.f32.mrb[0].mxu0
    %1350 = vmatprep.mubr.f32.mxu0 0.0
    %1351 = vmatmul.mubr.f32.gmra.mrb[0].mxu0 %v1279
    %v1352 = vpop.f32.mrb[0].mxu0
    %v1353 = vadd.f32 0.0, %v1352
    %v1354 = vpop.f32.mrb[0].mxu0
    %1355 = vdwg.mxu0
    %v1356 = vadd.f32 %v1067, %v1348
    %v1357 = vadd.f32 %v1068, %v1353
    %v1358 = vadd.f32 %v21, %v1356
    %v1359 = vadd.f32 %v22, %v1357
    %v1360 = vlaneseq
    %v1361 = vshrl.u32 %v1360, 7
    %v1362 = vsub.s32 3, %v1361
    %v1363 = vrot.slane %v23, %v1362
    %v1364 = vadd.f32 %v1358, %v1363
    %v1365 = vadd.f32 %v1359, %v1363
    %v1366 = vsel %vm28, %v1364, 0.0
    %1367 = vadd.xlane.f32.xlu0 %v1366
    %v1368 = vpop.xlane.xlu0 %1367
    %v1369 = vsel %vm28, %v1365, 0.0
    %1370 = vadd.xlane.f32.xlu0 %v1369
    %v1371 = vpop.xlane.xlu0 %1370
    %v1372 = vmul.f32 %v1368, %v35
    %v1373 = vmul.f32 %v1371, %v35
    %v1374 = vsub.f32 %v1364, %v1372
    %v1375 = vsub.f32 %v1365, %v1373
    %v1376 = vmul.f32 %v1374, %v1374
    %v1377 = vmul.f32 %v1375, %v1375
    %v1378 = vsel %vm28, %v1376, 0.0
    %1379 = vadd.xlane.f32.xlu0 %v1378
    %v1380 = vpop.xlane.xlu0 %1379
    %v1381 = vsel %vm28, %v1377, 0.0
    %1382 = vadd.xlane.f32.xlu0 %v1381
    %v1383 = vpop.xlane.xlu0 %1382
    %v1384 = vmul.f32 %v1380, %v35
    %v1385 = vmul.f32 %v1383, %v35
    %v1386 = vadd.f32 %v1384, 1e-05
    %v1387 = vadd.f32 %v1385, 1e-05
    %v1388 = vrsqrt.pop %v1386
    %v1389 = vmul.f32 %v1386, %v1388
    %vm1390 = vcmp.eq.f32.partialorder %v1386, inf
    %v1391 = vsel %vm1390, %v1386, %v1389
    %vm1392 = vcmp.eq.f32.partialorder %v1386, 0.0
    %v1393 = vand.u32 %v1386, 2147483648
    %v1394 = vsel %vm1392, %v1393, %v1391
    %v1395 = vrsqrt.pop %v1387
    %v1396 = vmul.f32 %v1387, %v1395
    %vm1397 = vcmp.eq.f32.partialorder %v1387, inf
    %v1398 = vsel %vm1397, %v1387, %v1396
    %vm1399 = vcmp.eq.f32.partialorder %v1387, 0.0
    %v1400 = vand.u32 %v1387, 2147483648
    %v1401 = vsel %vm1399, %v1400, %v1398
    %v1402 = vrcp.pop %v1394
    %v1403 = vmul.f32 %v1374, %v1402
    %v1404 = vrcp.pop %v1401
    %v1405 = vmul.f32 %v1375, %v1404
    %v1406 = vlaneseq
    %v1407 = vshrl.u32 %v1406, 7
    %v1408 = vsub.s32 4, %v1407
    %v1409 = vrot.slane %v23, %v1408
    %v1410 = vmul.f32 %v1403, %v1409
    %v1411 = vmul.f32 %v1405, %v1409
    %v1412 = vlaneseq
    %v1413 = vshrl.u32 %v1412, 7
    %v1414 = vsub.s32 5, %v1413
    %v1415 = vrot.slane %v23, %v1414
    %v1416 = vadd.f32 %v1410, %v1415
    %v1417 = vadd.f32 %v1411, %v1415
    %v1418 = vld [vmem:[%s2] sm:$0xff]
    %v1419 = vld [vmem:[%s2 + $0x8] sm:$0xff]
    %v1420 = vld [vmem:[%s2 + $0x10] sm:$0xff]
    %v1421 = vld [vmem:[%s2 + $0x18] sm:$0xff]
    %v1422 = vlaneseq
    %v1423 = vshrl.u32 %v1422, 7
    %v1424 = vsub.s32 6, %v1423
    %v1425 = vrot.slane %v23, %v1424
    %v1427 = vsel %vm28, %v1416, 0
    %v1430 = vsel %vm28, %v1417, 0
    %1432 = vmatprep.subr.mxu0 0.0
    %1433 = vmatpush1.msra.mxu0 %v1418
    %1434 = vmatprep.subr.mxu0 0.0
    %1435 = vmatpush1.msra.mxu0 %v1419
    %1436 = vmatprep.subr.mxu0 0.0
    %1437 = vmatpush1.msra.mxu0 %v1420
    %1438 = vmatprep.subr.mxu0 0.0
    %1439 = vmatpush1.msra.mxu0 %v1421
    %1440 = vmatprep.subr.mxu0 0.0
    %1441 = vmatpush1.msra.mxu0 0.0
    %1442 = vmatprep.subr.mxu0 0.0
    %1443 = vmatpush1.msra.mxu0 0.0
    %1444 = vmatprep.subr.mxu0 0.0
    %1445 = vmatpush1.msra.mxu0 0.0
    %1446 = vmatprep.subr.mxu0 0.0
    %1447 = vmatpush1.msra.mxu0 0.0
    %1448 = vmatprep.subr.mxu0 0.0
    %1449 = vmatpush1.msra.mxu0 0.0
    %1450 = vmatprep.subr.mxu0 0.0
    %1451 = vmatpush1.msra.mxu0 0.0
    %1452 = vmatprep.subr.mxu0 0.0
    %1453 = vmatpush1.msra.mxu0 0.0
    %1454 = vmatprep.subr.mxu0 0.0
    %1455 = vmatpush1.msra.mxu0 0.0
    %1456 = vmatprep.subr.mxu0 0.0
    %1457 = vmatpush1.msra.mxu0 0.0
    %1458 = vmatprep.subr.mxu0 0.0
    %1459 = vmatpush1.msra.mxu0 0.0
    %1460 = vmatprep.subr.mxu0 0.0
    %1461 = vmatpush1.msra.mxu0 0.0
    %1462 = vmatprep.subr.mxu0 0.0
    %1463 = vmatpush1.msra.mxu0 0.0
    %1464 = vmatprep.subr.mxu0 0.0
    %1465 = vmatpush1.msra.mxu0 0.0
    %1466 = vmatprep.subr.mxu0 0.0
    %1467 = vmatpush1.msra.mxu0 0.0
    %1468 = vmatprep.subr.mxu0 0.0
    %1469 = vmatpush1.msra.mxu0 0.0
    %1470 = vmatprep.subr.mxu0 0.0
    %1471 = vmatpush1.msra.mxu0 0.0
    %1472 = vmatprep.subr.mxu0 0.0
    %1473 = vmatpush1.msra.mxu0 0.0
    %1474 = vmatprep.subr.mxu0 0.0
    %1475 = vmatpush1.msra.mxu0 0.0
    %1476 = vmatprep.subr.mxu0 0.0
    %1477 = vmatpush1.msra.mxu0 0.0
    %1478 = vmatprep.subr.mxu0 0.0
    %1479 = vmatpush1.msra.mxu0 0.0
    %1480 = vmatprep.subr.mxu0 0.0
    %1481 = vmatpush1.msra.mxu0 0.0
    %1482 = vmatprep.subr.mxu0 0.0
    %1483 = vmatpush1.msra.mxu0 0.0
    %1484 = vmatprep.subr.mxu0 0.0
    %1485 = vmatpush1.msra.mxu0 0.0
    %1486 = vmatprep.subr.mxu0 0.0
    %1487 = vmatpush1.msra.mxu0 0.0
    %1488 = vmatprep.subr.mxu0 0.0
    %1489 = vmatpush1.msra.mxu0 0.0
    %1490 = vmatprep.subr.mxu0 0.0
    %1491 = vmatpush1.msra.mxu0 0.0
    %1492 = vmatprep.subr.mxu0 0.0
    %1493 = vmatpush1.msra.mxu0 0.0
    %1494 = vmatprep.subr.mxu0 0.0
    %1495 = vmatpush1.msra.mxu0 0.0
    %1496 = vmatprep.mubr.f32.mxu0 0.0
    %1497 = vmatmul.mubr.f32.gmra.mrb[0].mxu0 %v1427
    %v1498 = vpop.f32.mrb[0].mxu0
    %v1499 = vadd.f32 %v1425, %v1498
    %v1500 = vpop.f32.mrb[0].mxu0
    %1501 = vmatprep.mubr.f32.mxu0 0.0
    %1502 = vmatmul.mubr.f32.gmra.mrb[0].mxu0 %v1430
    %v1503 = vpop.f32.mrb[0].mxu0
    %v1504 = vadd.f32 %v1425, %v1503
    %v1505 = vpop.f32.mrb[0].mxu0
    %1506 = vdwg.mxu0
    %v1507 = vmul.f32 %v1499, 0.5
    %v1508 = vmul.f32 %v1504, 0.5
    %v1509 = vmul.f32 %v1499, 0.044715
    %v1510 = vmul.f32 %v1504, 0.044715
    %v1511 = vmul.f32 %v1509, %v1499
    %v1512 = vmul.f32 %v1510, %v1504
    %v1513 = vmul.f32 %v1511, %v1499
    %v1514 = vmul.f32 %v1512, %v1504
    %v1515 = vadd.f32 %v1499, %v1513
    %v1516 = vadd.f32 %v1504, %v1514
    %v1517 = vmul.f32 %v1515, 0.7978845
    %v1518 = vmul.f32 %v1516, 0.7978845
    %v1519 = vtanh.pop %v1517
    %v1520 = vtanh.pop %v1518
    %v1521 = vadd.f32 %v1519, 1.0
    %v1522 = vadd.f32 %v1520, 1.0
    %v1523 = vmul.f32 %v1507, %v1521
    %v1524 = vmul.f32 %v1508, %v1522
    %v1525 = vld [vmem:[%s3] sm:$0xff]
    %v1526 = vld [vmem:[%s3 + $0x8] sm:$0xff]
    %v1527 = vld [vmem:[%s3 + $0x10] sm:$0xff]
    %v1528 = vld [vmem:[%s3 + $0x18] sm:$0xff]
    %v1529 = vld [vmem:[%s3 + $0x20] sm:$0xff]
    %v1530 = vld [vmem:[%s3 + $0x28] sm:$0xff]
    %v1531 = vld [vmem:[%s3 + $0x30] sm:$0xff]
    %v1532 = vld [vmem:[%s3 + $0x38] sm:$0xff]
    %v1533 = vld [vmem:[%s3 + $0x40] sm:$0xff]
    %v1534 = vld [vmem:[%s3 + $0x48] sm:$0xff]
    %v1535 = vld [vmem:[%s3 + $0x50] sm:$0xff]
    %v1536 = vld [vmem:[%s3 + $0x58] sm:$0xff]
    %v1537 = vld [vmem:[%s3 + $0x60] sm:$0xff]
    %v1538 = vld [vmem:[%s3 + $0x68] sm:$0xff]
    %v1539 = vld [vmem:[%s3 + $0x70] sm:$0xff]
    %v1540 = vld [vmem:[%s3 + $0x78] sm:$0xff]
    %v1541 = vlaneseq
    %v1542 = vshrl.u32 %v1541, 7
    %v1543 = vsub.s32 7, %v1542
    %v1544 = vrot.slane %v23, %v1543
    %1545 = vmatprep.subr.mxu0 0.0
    %1546 = vmatpush1.msra.mxu0 %v1525
    %1547 = vmatprep.subr.mxu0 0.0
    %1548 = vmatpush1.msra.mxu0 %v1526
    %1549 = vmatprep.subr.mxu0 0.0
    %1550 = vmatpush1.msra.mxu0 %v1527
    %1551 = vmatprep.subr.mxu0 0.0
    %1552 = vmatpush1.msra.mxu0 %v1528
    %1553 = vmatprep.subr.mxu0 0.0
    %1554 = vmatpush1.msra.mxu0 %v1529
    %1555 = vmatprep.subr.mxu0 0.0
    %1556 = vmatpush1.msra.mxu0 %v1530
    %1557 = vmatprep.subr.mxu0 0.0
    %1558 = vmatpush1.msra.mxu0 %v1531
    %1559 = vmatprep.subr.mxu0 0.0
    %1560 = vmatpush1.msra.mxu0 %v1532
    %1561 = vmatprep.subr.mxu0 0.0
    %1562 = vmatpush1.msra.mxu0 %v1533
    %1563 = vmatprep.subr.mxu0 0.0
    %1564 = vmatpush1.msra.mxu0 %v1534
    %1565 = vmatprep.subr.mxu0 0.0
    %1566 = vmatpush1.msra.mxu0 %v1535
    %1567 = vmatprep.subr.mxu0 0.0
    %1568 = vmatpush1.msra.mxu0 %v1536
    %1569 = vmatprep.subr.mxu0 0.0
    %1570 = vmatpush1.msra.mxu0 %v1537
    %1571 = vmatprep.subr.mxu0 0.0
    %1572 = vmatpush1.msra.mxu0 %v1538
    %1573 = vmatprep.subr.mxu0 0.0
    %1574 = vmatpush1.msra.mxu0 %v1539
    %1575 = vmatprep.subr.mxu0 0.0
    %1576 = vmatpush1.msra.mxu0 %v1540
    %1577 = vmatprep.subr.mxu0 0.0
    %1578 = vmatpush1.msra.mxu0 0.0
    %1579 = vmatprep.subr.mxu0 0.0
    %1580 = vmatpush1.msra.mxu0 0.0
    %1581 = vmatprep.subr.mxu0 0.0
    %1582 = vmatpush1.msra.mxu0 0.0
    %1583 = vmatprep.subr.mxu0 0.0
    %1584 = vmatpush1.msra.mxu0 0.0
    %1585 = vmatprep.subr.mxu0 0.0
    %1586 = vmatpush1.msra.mxu0 0.0
    %1587 = vmatprep.subr.mxu0 0.0
    %1588 = vmatpush1.msra.mxu0 0.0
    %1589 = vmatprep.subr.mxu0 0.0
    %1590 = vmatpush1.msra.mxu0 0.0
    %1591 = vmatprep.subr.mxu0 0.0
    %1592 = vmatpush1.msra.mxu0 0.0
    %1593 = vmatprep.subr.mxu0 0.0
    %1594 = vmatpush1.msra.mxu0 0.0
    %1595 = vmatprep.subr.mxu0 0.0
    %1596 = vmatpush1.msra.mxu0 0.0
    %1597 = vmatprep.subr.mxu0 0.0
    %1598 = vmatpush1.msra.mxu0 0.0
    %1599 = vmatprep.subr.mxu0 0.0
    %1600 = vmatpush1.msra.mxu0 0.0
    %1601 = vmatprep.subr.mxu0 0.0
    %1602 = vmatpush1.msra.mxu0 0.0
    %1603 = vmatprep.subr.mxu0 0.0
    %1604 = vmatpush1.msra.mxu0 0.0
    %1605 = vmatprep.subr.mxu0 0.0
    %1606 = vmatpush1.msra.mxu0 0.0
    %1607 = vmatprep.subr.mxu0 0.0
    %1608 = vmatpush1.msra.mxu0 0.0
    %1609 = vmatprep.mubr.f32.mxu0 0.0
    %1610 = vmatmul.mubr.f32.gmra.mrb[0].mxu0 %v1523
    %v1611 = vpop.f32.mrb[0].mxu0
    %v1612 = vadd.f32 %v1544, %v1611
    %v1613 = vpop.f32.mrb[0].mxu0
    %1614 = vmatprep.mubr.f32.mxu0 0.0
    %1615 = vmatmul.mubr.f32.gmra.mrb[0].mxu0 %v1524
    %v1616 = vpop.f32.mrb[0].mxu0
    %v1617 = vadd.f32 %v1544, %v1616
    %v1618 = vpop.f32.mrb[0].mxu0
    %1619 = vdwg.mxu0
    %v1620 = vadd.f32 %v1364, %v1612
    %v1621 = vadd.f32 %v1365, %v1617
    %1622 = vst.msk [vmem:[#allocation2] sm:$0xff] %vm28, %v1620
    %1623 = vst.msk [vmem:[#allocation2 + $0x8] sm:$0xff] %vm28, %v1621
    // Predicated region
    $region22: #{tpu_custom_call.1} parent=1 // pred_check
      _
    $region23: #{tpu_custom_call.1} parent=1 // pred_check_branch
      %1625 = sbr.rel (0) target = $region25
    $region24: #{tpu_custom_call.1} parent=1 // pred_region
      %s1627 = ssub.s32 256, 256
      %1628 = vsyncadd [#allocation3], %s1627
      %s1629 = sshll.u32 [#allocation2], 4
      %s1630 = int_to_ptr.vmem [resolvable:$true] %s1629
      %1635 = dma.vmem_to_hbm [thread:$0]  %s1630, 256, %s5, [#allocation3], 128, 128, 8
    $region25: #{tpu_custom_call.1} parent=1 // pred_fallthru
      _
    // Predicated region
    $region26: #{tpu_custom_call.1} parent=1 // pred_check
      _
    $region27: #{tpu_custom_call.1} parent=1 // pred_check_branch
      %1637 = sbr.rel (0) target = $region29
    $region28: #{tpu_custom_call.1} parent=1 // pred_region
      %1638 = dma.done [#allocation3], 256
    $region29: #{tpu_custom_call.1} parent=1 // pred_fallthru
      _
    %1639 = vsyncpa [#allocation3], 1

</llo_original>
